<compile_context>
chip_gen: v5e
topology: v5e:2x2
jax: 0.10.0
libtpu: 0.0.40
codegen_flags: <defaults>
</compile_context>

<pallas_src>
import functools

import jax
import jax.numpy as jnp
import numpy as np
from jax import lax
from jax.experimental import pallas as pl
from jax.experimental.pallas import tpu as pltpu

OUTPUT_SIZE = 5
LANE = 128
BF16_SUBLANE = 16  # bf16 LHS min tile is (16, 128)


def _round_up(x, m):
    return (x + m - 1) // m * m


def _resident_vmem_spec():
    # Whole array resident in VMEM for the whole call (weights / biases).
    return pl.BlockSpec(memory_space=pltpu.MemorySpace.VMEM)


# ---------------------------------------------------------------------------
# Fused kernel: per instance-tile 7-layer MLP + online pooling accumulator.
# ---------------------------------------------------------------------------
def make_kernel(pooling, n_valid, n_pad, tile_n, num_layers):
    need_mask = n_pad > n_valid

    def kernel(x_ref, alpha_ref, *rest):
        wb = rest[: 2 * num_layers]                 # w1,b1,...,w7,b7 refs
        pred_ref = rest[2 * num_layers]             # (tile_n, C_pad) bf16
        pool_ref = rest[2 * num_layers + 1]         # (1, C_pad) f32 (resident)
        m_sc = rest[2 * num_layers + 2]             # (1, C_pad) f32 scratch
        l_sc = rest[2 * num_layers + 3]
        acc_sc = rest[2 * num_layers + 4]

        i = pl.program_id(0)
        last = pl.num_programs(0) - 1

        # ---- init pooling accumulators at the first instance tile ----
        @pl.when(i == 0)
        def _init():
            if pooling == "max":
                acc_sc[...] = jnp.full_like(acc_sc, -jnp.inf)
            elif pooling == "mean":
                acc_sc[...] = jnp.zeros_like(acc_sc)
            else:  # 'auto' / 'softmax'
                m_sc[...] = jnp.full_like(m_sc, -jnp.inf)
                l_sc[...] = jnp.zeros_like(l_sc)
                acc_sc[...] = jnp.zeros_like(acc_sc)

        # ---- 7-layer MLP on this tile: bf16 MXU matmuls, f32 accumulation,
        #      bias add / ReLU kept in f32 (safe on v5e's f32-only VPU). ----
        h = x_ref[...]                              # bf16 (tile_n, F_pad)
        hf = None
        for li in range(num_layers):
            w = wb[2 * li][...]                     # bf16 (in_pad, out_pad)
            b = wb[2 * li + 1][...]                 # f32  (1, out_pad)
            hf = jnp.dot(h, w, preferred_element_type=jnp.float32) + b
            if li < num_layers - 1:
                hf = jnp.maximum(hf, 0.0)
                h = hf.astype(jnp.bfloat16)
        pred_ref[...] = hf.astype(pred_ref.dtype)   # bf16 lane-dense writeback

        # ---- online pooling over the valid instance rows of this tile ----
        if need_mask:
            row_ids = i * tile_n + lax.broadcasted_iota(jnp.int32, hf.shape, 0)
            valid = row_ids < n_valid
        else:
            valid = None

        if pooling == "max":
            hm = hf if valid is None else jnp.where(valid, hf, -jnp.inf)
            acc_sc[...] = jnp.maximum(acc_sc[...],
                                      jnp.max(hm, axis=0, keepdims=True))
        elif pooling == "mean":
            hm = hf if valid is None else jnp.where(valid, hf, 0.0)
            acc_sc[...] = acc_sc[...] + jnp.sum(hm, axis=0, keepdims=True)
        else:  # 'auto' (alpha-weighted) or 'softmax' (alpha = 1)
            ax = hf * alpha_ref[...] if pooling == "auto" else hf
            if valid is not None:
                ax = jnp.where(valid, ax, -jnp.inf)     # masked rows drop out
            m_new = jnp.maximum(m_sc[...], jnp.max(ax, axis=0, keepdims=True))
            rescale = jnp.exp(m_sc[...] - m_new)        # (1, C_pad)
            p = jnp.exp(ax - m_new)                     # masked rows -> 0
            l_sc[...] = rescale * l_sc[...] + jnp.sum(p, axis=0, keepdims=True)
            acc_sc[...] = (rescale * acc_sc[...]
                           + jnp.sum(hf * p, axis=0, keepdims=True))
            m_sc[...] = m_new

        # ---- finalize at the last instance tile ----
        @pl.when(i == last)
        def _finalize():
            if pooling == "max":
                pool_ref[...] = acc_sc[...]
            elif pooling == "mean":
                pool_ref[...] = acc_sc[...] * jnp.float32(1.0 / n_valid)
            else:
                # Exact divide on a single (1, C_pad) vector: negligible cost,
                # avoids approx-reciprocal error in the pooled weights.
                pool_ref[...] = acc_sc[...] / l_sc[...]

    return kernel


# ---------------------------------------------------------------------------
# Parameter construction (mirrors nn.Linear init shapes) + lane padding.
# ---------------------------------------------------------------------------
def init_params(feature_num, key):
    F = feature_num
    dims = [F, 3 * F, 5 * F, 7 * F, 5 * F, 3 * F, F, OUTPUT_SIZE]
    params = []
    for i in range(len(dims) - 1):
        fan_in, fan_out = dims[i], dims[i + 1]
        key, kw, kb = jax.random.split(key, 3)
        bound = 1.0 / np.sqrt(fan_in)
        w = jax.random.uniform(kw, (fan_in, fan_out), jnp.float32, -bound, bound)
        b = jax.random.uniform(kb, (1, fan_out), jnp.float32, -bound, bound)
        params.append((w, b))
    alpha = jnp.ones((OUTPUT_SIZE,), jnp.float32)      # nn.Parameter(ones(5))
    return params, alpha


def build_padded_params(params, alpha):
    """Zero-pad every width up to a multiple of 128; weights -> bf16."""
    padded = []
    for w, b in params:
        fi, fo = w.shape
        fi_p, fo_p = _round_up(fi, LANE), _round_up(fo, LANE)
        wp = jnp.pad(w, ((0, fi_p - fi), (0, fo_p - fo))).astype(jnp.bfloat16)
        bp = jnp.pad(b, ((0, 0), (0, fo_p - fo))).astype(jnp.float32)
        padded.append((wp, bp))
    c_pad = _round_up(OUTPUT_SIZE, LANE)
    alpha_p = jnp.concatenate(
        [alpha.reshape(1, -1).astype(jnp.float32),
         jnp.ones((1, c_pad - OUTPUT_SIZE), jnp.float32)], axis=1)
    return padded, alpha_p


# ---------------------------------------------------------------------------
# Forward pass wrapper: single fused pallas_call, grid over the instance axis.
# ---------------------------------------------------------------------------
@functools.partial(jax.jit, static_argnames=("pooling", "tile_n"))
def adaptive_pooling_classifier_forward(x, params_padded, alpha_padded,
                                        pooling="auto", tile_n=None):
    B, N, F = x.shape
    if tile_n is None:
        tile_n = 128 if N >= 128 else _round_up(max(N, BF16_SUBLANE), BF16_SUBLANE)
    tile_n = _round_up(tile_n, BF16_SUBLANE)
    n_tiles = -(-N // tile_n)
    N_pad = n_tiles * tile_n
    F_pad = _round_up(F, LANE)
    C_pad = _round_up(OUTPUT_SIZE, LANE)
    num_layers = len(params_padded)

    # Only batch 0 is pushed through the predictor (matches the reference
    # Python loop over x[0]).  Cast to bf16 up front so the kernel's first
    # matmul consumes it directly (halves the x HBM->VMEM DMA bytes).
    x0 = x[0].astype(jnp.bfloat16)
    if (N_pad, F_pad) != (N, F):
        # TODO(synk): pad into a VMEM scratch in-kernel instead of
        # materializing a padded HBM copy when F is not lane-aligned.
        x0 = jnp.pad(x0, ((0, N_pad - N), (0, F_pad - F)))

    flat = [t for wb in params_padded for t in wb]     # w1,b1,...,w7,b7

    # --- generation-aware VMEM budget based on the actual resident set ---
    weight_bytes = sum(int(np.prod(t.shape)) * t.dtype.itemsize for t in flat)
    max_w = max(w.shape[1] for w, _ in params_padded)  # widest layer (7F_pad)
    io_bytes = (2 * tile_n * F_pad * 2        # x tile, double-buffered, bf16
                + 2 * tile_n * C_pad * 2      # pred tile, double-buffered, bf16
                + 4 * C_pad * 4)              # alpha + pool blocks
    scratch_bytes = 3 * C_pad * 4
    act_bytes = 3 * tile_n * max_w * 4        # live f32 act + bf16 copy + slack
    needed = int(1.25 * (weight_bytes + io_bytes + scratch_bytes + act_bytes)) \
        + (4 << 20)
    try:
        vmem_cap = int(pltpu.get_tpu_info().vmem_capacity_bytes)
    except Exception:   # fallback if HW query is unavailable
        vmem_cap = 64 << 20
    vmem_limit = int(min(max(needed, 16 << 20), int(0.85 * vmem_cap)))
    # TODO(synk): if `needed` exceeds the cap (large F on v7x's 64 MiB),
    # switch the 5Fx7F / 7Fx5F layers to HBM weight streaming.

    flops = 2 * N_pad * sum(w.shape[0] * w.shape[1] for w, _ in params_padded)
    transcendentals = N_pad * C_pad if pooling in ("auto", "softmax") else 0
    bytes_accessed = int(N_pad * F_pad * 2 + weight_bytes + C_pad * 4
                         + N_pad * C_pad * 2 + C_pad * 4)

    kernel = make_kernel(pooling, N, N_pad, tile_n, num_layers)

    grid_spec = pltpu.PrefetchScalarGridSpec(
        num_scalar_prefetch=0,
        grid=(n_tiles,),
        in_specs=[pl.BlockSpec((tile_n, F_pad), lambda i: (i, 0)),   # x tile
                  pl.BlockSpec((1, C_pad), lambda i: (0, 0))]        # alpha
                 + [_resident_vmem_spec()] * len(flat),              # weights
        out_specs=(pl.BlockSpec((tile_n, C_pad), lambda i: (i, 0)),  # pred
                   pl.BlockSpec((1, C_pad), lambda i: (0, 0))),      # pool
        scratch_shapes=[pltpu.VMEM((1, C_pad), jnp.float32)] * 3,
    )

    pred_pad, pool_pad = pl.pallas_call(
        kernel,
        out_shape=(jax.ShapeDtypeStruct((N_pad, C_pad), jnp.bfloat16),
                   jax.ShapeDtypeStruct((1, C_pad), jnp.float32)),
        grid_spec=grid_spec,
        compiler_params=pltpu.CompilerParams(
            # Pooling accumulator is carried across the instance axis.
            dimension_semantics=("arbitrary",),
            vmem_limit_bytes=vmem_limit),
        cost_estimate=pl.CostEstimate(flops=int(flops),
                                      transcendentals=int(transcendentals),
                                      bytes_accessed=bytes_accessed),
    )(x0, alpha_padded, *flat)

    # Batch rows > 0 are never predicted; their pooled result is exactly 0
    # for every pooling mode (pooling of all-zero rows), so fill with zeros.
    pred0 = pred_pad[:N, :OUTPUT_SIZE].astype(jnp.float32)
    predicted_x = jnp.pad(pred0[None], ((0, B - 1), (0, 0), (0, 0)))
    result = jnp.pad(pool_pad[:, :OUTPUT_SIZE], ((0, B - 1), (0, 0)))
    return result, predicted_x


# ---------------------------------------------------------------------------
# Pure-JAX reference (same bf16-weight mixed precision as the kernel; the
# original PyTorch module is f32 end-to-end -- callers wanting strict f32
# parity should use f32 weights/matmuls).
# ---------------------------------------------------------------------------
def reference_forward(x, params, alpha, pooling="auto"):
    B, N, F = x.shape
    h = x[0].astype(jnp.float32)
    for i, (w, b) in enumerate(params):
        h = jnp.dot(h.astype(jnp.bfloat16), w.astype(jnp.bfloat16),
                    preferred_element_type=jnp.float32) + b
        if i < len(params) - 1:
            h = jnp.maximum(h, 0.0)
    predicted_x = jnp.zeros((B, N, OUTPUT_SIZE), jnp.float32).at[0].set(h)
    if pooling == "max":
        result = jnp.max(predicted_x, axis=1)
    elif pooling == "mean":
        result = jnp.mean(predicted_x, axis=1)
    else:
        ax = predicted_x * alpha if pooling == "auto" else predicted_x
        m = jnp.max(ax, axis=1, keepdims=True)
        s = jnp.exp(ax - m)
        w = s / jnp.sum(s, axis=1, keepdims=True)
        result = jnp.sum(predicted_x * w, axis=1)
    return result, predicted_x


if __name__ == "__main__":
    key = jax.random.PRNGKey(0)
    k_x, k_p = jax.random.split(key)

    B, N, F = 2, 40, 16                                 # batch, instances, features
    x = jax.random.normal(k_x, (B, N, F), jnp.float32)

    params, alpha = init_params(F, k_p)
    params_padded, alpha_padded = build_padded_params(params, alpha)

    result = predicted_x = None
    for pooling in ("auto", "max", "mean", "softmax"):
        # tile_n=16 -> 3 instance tiles: exercises the grid, the i==0 init /
        # last-step finalize, online softmax rescaling and padded-row masking.
        result, predicted_x = adaptive_pooling_classifier_forward(
            x, params_padded, alpha_padded, pooling=pooling, tile_n=16)
        jax.block_until_ready((result, predicted_x))

        ref_result, ref_pred = reference_forward(x, params, alpha, pooling=pooling)
        np.testing.assert_allclose(np.asarray(predicted_x), np.asarray(ref_pred),
                                   rtol=2e-2, atol=2e-2)
        np.testing.assert_allclose(np.asarray(result), np.asarray(ref_result),
                                   rtol=2e-2, atol=2e-2)

    # Also check the default (single-tile) path.
    result, predicted_x = adaptive_pooling_classifier_forward(
        x, params_padded, alpha_padded, pooling="auto")
    jax.block_until_ready((result, predicted_x))
    ref_result, ref_pred = reference_forward(x, params, alpha, pooling="auto")
    np.testing.assert_allclose(np.asarray(predicted_x), np.asarray(ref_pred),
                               rtol=2e-2, atol=2e-2)
    np.testing.assert_allclose(np.asarray(result), np.asarray(ref_result),
                               rtol=2e-2, atol=2e-2)

    assert result.shape == (B, OUTPUT_SIZE)
    assert predicted_x.shape == (B, N, OUTPUT_SIZE)
    print("KERNEL_OK")
</pallas_src>

<mosaic_0001>
module attributes {stable_mosaic.version = 11 : i64} {
  func.func @kernel(%arg0: i32, %arg1: memref<16x128xbf16, #tpu.memory_space<vmem>>, %arg2: memref<1x128xf32, #tpu.memory_space<vmem>>, %arg3: memref<128x128xbf16, #tpu.memory_space<vmem>>, %arg4: memref<1x128xf32, #tpu.memory_space<vmem>>, %arg5: memref<128x128xbf16, #tpu.memory_space<vmem>>, %arg6: memref<1x128xf32, #tpu.memory_space<vmem>>, %arg7: memref<128x128xbf16, #tpu.memory_space<vmem>>, %arg8: memref<1x128xf32, #tpu.memory_space<vmem>>, %arg9: memref<128x128xbf16, #tpu.memory_space<vmem>>, %arg10: memref<1x128xf32, #tpu.memory_space<vmem>>, %arg11: memref<128x128xbf16, #tpu.memory_space<vmem>>, %arg12: memref<1x128xf32, #tpu.memory_space<vmem>>, %arg13: memref<128x128xbf16, #tpu.memory_space<vmem>>, %arg14: memref<1x128xf32, #tpu.memory_space<vmem>>, %arg15: memref<128x128xbf16, #tpu.memory_space<vmem>>, %arg16: memref<1x128xf32, #tpu.memory_space<vmem>>, %arg17: memref<16x128xbf16, #tpu.memory_space<vmem>>, %arg18: memref<1x128xf32, #tpu.memory_space<vmem>>, %arg19: memref<1x128xf32, #tpu.memory_space<vmem>>, %arg20: memref<1x128xf32, #tpu.memory_space<vmem>>, %arg21: memref<1x128xf32, #tpu.memory_space<vmem>>) attributes {dimension_semantics = [#tpu.dimension_semantics<arbitrary>], iteration_bounds = array<i64: 3>, scalar_prefetch = 0 : i64, scratch_operands = 3 : i64, tpu.core_type = #tpu.core_type<tc>, window_params = [{transform_indices = @transform_0, window_bounds = array<i64: 16, 128>}, {pipeline_mode = #tpu.pipeline_mode<synchronous>, transform_indices = @transform_1, window_bounds = array<i64: 1, 128>}, {pipeline_mode = #tpu.pipeline_mode<synchronous>, transform_indices = @transform_2, window_bounds = array<i64: 128, 128>}, {pipeline_mode = #tpu.pipeline_mode<synchronous>, transform_indices = @transform_3, window_bounds = array<i64: 1, 128>}, {pipeline_mode = #tpu.pipeline_mode<synchronous>, transform_indices = @transform_4, window_bounds = array<i64: 128, 128>}, {pipeline_mode = #tpu.pipeline_mode<synchronous>, transform_indices = @transform_5, window_bounds = array<i64: 1, 128>}, {pipeline_mode = #tpu.pipeline_mode<synchronous>, transform_indices = @transform_6, window_bounds = array<i64: 128, 128>}, {pipeline_mode = #tpu.pipeline_mode<synchronous>, transform_indices = @transform_7, window_bounds = array<i64: 1, 128>}, {pipeline_mode = #tpu.pipeline_mode<synchronous>, transform_indices = @transform_8, window_bounds = array<i64: 128, 128>}, {pipeline_mode = #tpu.pipeline_mode<synchronous>, transform_indices = @transform_9, window_bounds = array<i64: 1, 128>}, {pipeline_mode = #tpu.pipeline_mode<synchronous>, transform_indices = @transform_10, window_bounds = array<i64: 128, 128>}, {pipeline_mode = #tpu.pipeline_mode<synchronous>, transform_indices = @transform_11, window_bounds = array<i64: 1, 128>}, {pipeline_mode = #tpu.pipeline_mode<synchronous>, transform_indices = @transform_12, window_bounds = array<i64: 128, 128>}, {pipeline_mode = #tpu.pipeline_mode<synchronous>, transform_indices = @transform_13, window_bounds = array<i64: 1, 128>}, {pipeline_mode = #tpu.pipeline_mode<synchronous>, transform_indices = @transform_14, window_bounds = array<i64: 128, 128>}, {pipeline_mode = #tpu.pipeline_mode<synchronous>, transform_indices = @transform_15, window_bounds = array<i64: 1, 128>}, {transform_indices = @transform_16, window_bounds = array<i64: 16, 128>}, {pipeline_mode = #tpu.pipeline_mode<synchronous>, transform_indices = @transform_17, window_bounds = array<i64: 1, 128>}]} {
    %c0_i32 = arith.constant 0 : i32
    %0 = arith.cmpi eq, %arg0, %c0_i32 : i32
    %1 = arith.extui %0 : i1 to i32
    %c0_i32_0 = arith.constant 0 : i32
    %2 = arith.cmpi ne, %1, %c0_i32_0 : i32
    scf.if %2 {
      %cst_65 = arith.constant 0xFF800000 : f32
      %97 = vector.broadcast %cst_65 : f32 to vector<1x128xf32>
      %c0_66 = arith.constant 0 : index
      %c0_67 = arith.constant 0 : index
      %98 = vector.load %arg19[%c0_66, %c0_67] : memref<1x128xf32, #tpu.memory_space<vmem>>, vector<1x128xf32>
      tpu.vector_store %arg19[%c0_66, %c0_67], %97 {strides = array<i32>} : memref<1x128xf32, #tpu.memory_space<vmem>>, vector<1x128xf32>,
      %cst_68 = arith.constant 0.000000e+00 : f32
      %99 = vector.broadcast %cst_68 : f32 to vector<1x128xf32>
      %c0_69 = arith.constant 0 : index
      %c0_70 = arith.constant 0 : index
      %100 = vector.load %arg20[%c0_69, %c0_70] : memref<1x128xf32, #tpu.memory_space<vmem>>, vector<1x128xf32>
      tpu.vector_store %arg20[%c0_69, %c0_70], %99 {strides = array<i32>} : memref<1x128xf32, #tpu.memory_space<vmem>>, vector<1x128xf32>,
      %cst_71 = arith.constant 0.000000e+00 : f32
      %101 = vector.broadcast %cst_71 : f32 to vector<1x128xf32>
      %c0_72 = arith.constant 0 : index
      %c0_73 = arith.constant 0 : index
      %102 = vector.load %arg21[%c0_72, %c0_73] : memref<1x128xf32, #tpu.memory_space<vmem>>, vector<1x128xf32>
      tpu.vector_store %arg21[%c0_72, %c0_73], %101 {strides = array<i32>} : memref<1x128xf32, #tpu.memory_space<vmem>>, vector<1x128xf32>,
    } else {
    }
    %c0 = arith.constant 0 : index
    %c0_1 = arith.constant 0 : index
    %3 = vector.load %arg1[%c0, %c0_1] : memref<16x128xbf16, #tpu.memory_space<vmem>>, vector<16x128xbf16>
    %c0_2 = arith.constant 0 : index
    %c0_3 = arith.constant 0 : index
    %4 = vector.load %arg3[%c0_2, %c0_3] : memref<128x128xbf16, #tpu.memory_space<vmem>>, vector<128x128xbf16>
    %c0_4 = arith.constant 0 : index
    %c0_5 = arith.constant 0 : index
    %5 = vector.load %arg4[%c0_4, %c0_5] : memref<1x128xf32, #tpu.memory_space<vmem>>, vector<1x128xf32>
    %cst = arith.constant dense<0.000000e+00> : vector<16x128xf32>
    %6 = tpu.matmul %3, %4, %cst {dimension_numbers = #tpu.dot_dimension_numbers<[1], [0], [0], [1], [0, 0, 1, 1], [], []>} : vector<16x128xbf16>, vector<128x128xbf16>, vector<16x128xf32> -> vector<16x128xf32>
    %7 = vector.broadcast %5 : vector<1x128xf32> to vector<16x128xf32>
    %8 = arith.addf %6, %7 : vector<16x128xf32>
    %cst_6 = arith.constant 0.000000e+00 : f32
    %9 = vector.broadcast %cst_6 : f32 to vector<16x128xf32>
    %10 = arith.maximumf %8, %9 : vector<16x128xf32>
    %11 = arith.truncf %10 : vector<16x128xf32> to vector<16x128xbf16>
    %c0_7 = arith.constant 0 : index
    %c0_8 = arith.constant 0 : index
    %12 = vector.load %arg5[%c0_7, %c0_8] : memref<128x128xbf16, #tpu.memory_space<vmem>>, vector<128x128xbf16>
    %c0_9 = arith.constant 0 : index
    %c0_10 = arith.constant 0 : index
    %13 = vector.load %arg6[%c0_9, %c0_10] : memref<1x128xf32, #tpu.memory_space<vmem>>, vector<1x128xf32>
    %cst_11 = arith.constant dense<0.000000e+00> : vector<16x128xf32>
    %14 = tpu.matmul %11, %12, %cst_11 {dimension_numbers = #tpu.dot_dimension_numbers<[1], [0], [0], [1], [0, 0, 1, 1], [], []>} : vector<16x128xbf16>, vector<128x128xbf16>, vector<16x128xf32> -> vector<16x128xf32>
    %15 = vector.broadcast %13 : vector<1x128xf32> to vector<16x128xf32>
    %16 = arith.addf %14, %15 : vector<16x128xf32>
    %cst_12 = arith.constant 0.000000e+00 : f32
    %17 = vector.broadcast %cst_12 : f32 to vector<16x128xf32>
    %18 = arith.maximumf %16, %17 : vector<16x128xf32>
    %19 = arith.truncf %18 : vector<16x128xf32> to vector<16x128xbf16>
    %c0_13 = arith.constant 0 : index
    %c0_14 = arith.constant 0 : index
    %20 = vector.load %arg7[%c0_13, %c0_14] : memref<128x128xbf16, #tpu.memory_space<vmem>>, vector<128x128xbf16>
    %c0_15 = arith.constant 0 : index
    %c0_16 = arith.constant 0 : index
    %21 = vector.load %arg8[%c0_15, %c0_16] : memref<1x128xf32, #tpu.memory_space<vmem>>, vector<1x128xf32>
    %cst_17 = arith.constant dense<0.000000e+00> : vector<16x128xf32>
    %22 = tpu.matmul %19, %20, %cst_17 {dimension_numbers = #tpu.dot_dimension_numbers<[1], [0], [0], [1], [0, 0, 1, 1], [], []>} : vector<16x128xbf16>, vector<128x128xbf16>, vector<16x128xf32> -> vector<16x128xf32>
    %23 = vector.broadcast %21 : vector<1x128xf32> to vector<16x128xf32>
    %24 = arith.addf %22, %23 : vector<16x128xf32>
    %cst_18 = arith.constant 0.000000e+00 : f32
    %25 = vector.broadcast %cst_18 : f32 to vector<16x128xf32>
    %26 = arith.maximumf %24, %25 : vector<16x128xf32>
    %27 = arith.truncf %26 : vector<16x128xf32> to vector<16x128xbf16>
    %c0_19 = arith.constant 0 : index
    %c0_20 = arith.constant 0 : index
    %28 = vector.load %arg9[%c0_19, %c0_20] : memref<128x128xbf16, #tpu.memory_space<vmem>>, vector<128x128xbf16>
    %c0_21 = arith.constant 0 : index
    %c0_22 = arith.constant 0 : index
    %29 = vector.load %arg10[%c0_21, %c0_22] : memref<1x128xf32, #tpu.memory_space<vmem>>, vector<1x128xf32>
    %cst_23 = arith.constant dense<0.000000e+00> : vector<16x128xf32>
    %30 = tpu.matmul %27, %28, %cst_23 {dimension_numbers = #tpu.dot_dimension_numbers<[1], [0], [0], [1], [0, 0, 1, 1], [], []>} : vector<16x128xbf16>, vector<128x128xbf16>, vector<16x128xf32> -> vector<16x128xf32>
    %31 = vector.broadcast %29 : vector<1x128xf32> to vector<16x128xf32>
    %32 = arith.addf %30, %31 : vector<16x128xf32>
    %cst_24 = arith.constant 0.000000e+00 : f32
    %33 = vector.broadcast %cst_24 : f32 to vector<16x128xf32>
    %34 = arith.maximumf %32, %33 : vector<16x128xf32>
    %35 = arith.truncf %34 : vector<16x128xf32> to vector<16x128xbf16>
    %c0_25 = arith.constant 0 : index
    %c0_26 = arith.constant 0 : index
    %36 = vector.load %arg11[%c0_25, %c0_26] : memref<128x128xbf16, #tpu.memory_space<vmem>>, vector<128x128xbf16>
    %c0_27 = arith.constant 0 : index
    %c0_28 = arith.constant 0 : index
    %37 = vector.load %arg12[%c0_27, %c0_28] : memref<1x128xf32, #tpu.memory_space<vmem>>, vector<1x128xf32>
    %cst_29 = arith.constant dense<0.000000e+00> : vector<16x128xf32>
    %38 = tpu.matmul %35, %36, %cst_29 {dimension_numbers = #tpu.dot_dimension_numbers<[1], [0], [0], [1], [0, 0, 1, 1], [], []>} : vector<16x128xbf16>, vector<128x128xbf16>, vector<16x128xf32> -> vector<16x128xf32>
    %39 = vector.broadcast %37 : vector<1x128xf32> to vector<16x128xf32>
    %40 = arith.addf %38, %39 : vector<16x128xf32>
    %cst_30 = arith.constant 0.000000e+00 : f32
    %41 = vector.broadcast %cst_30 : f32 to vector<16x128xf32>
    %42 = arith.maximumf %40, %41 : vector<16x128xf32>
    %43 = arith.truncf %42 : vector<16x128xf32> to vector<16x128xbf16>
    %c0_31 = arith.constant 0 : index
    %c0_32 = arith.constant 0 : index
    %44 = vector.load %arg13[%c0_31, %c0_32] : memref<128x128xbf16, #tpu.memory_space<vmem>>, vector<128x128xbf16>
    %c0_33 = arith.constant 0 : index
    %c0_34 = arith.constant 0 : index
    %45 = vector.load %arg14[%c0_33, %c0_34] : memref<1x128xf32, #tpu.memory_space<vmem>>, vector<1x128xf32>
    %cst_35 = arith.constant dense<0.000000e+00> : vector<16x128xf32>
    %46 = tpu.matmul %43, %44, %cst_35 {dimension_numbers = #tpu.dot_dimension_numbers<[1], [0], [0], [1], [0, 0, 1, 1], [], []>} : vector<16x128xbf16>, vector<128x128xbf16>, vector<16x128xf32> -> vector<16x128xf32>
    %47 = vector.broadcast %45 : vector<1x128xf32> to vector<16x128xf32>
    %48 = arith.addf %46, %47 : vector<16x128xf32>
    %cst_36 = arith.constant 0.000000e+00 : f32
    %49 = vector.broadcast %cst_36 : f32 to vector<16x128xf32>
    %50 = arith.maximumf %48, %49 : vector<16x128xf32>
    %51 = arith.truncf %50 : vector<16x128xf32> to vector<16x128xbf16>
    %c0_37 = arith.constant 0 : index
    %c0_38 = arith.constant 0 : index
    %52 = vector.load %arg15[%c0_37, %c0_38] : memref<128x128xbf16, #tpu.memory_space<vmem>>, vector<128x128xbf16>
    %c0_39 = arith.constant 0 : index
    %c0_40 = arith.constant 0 : index
    %53 = vector.load %arg16[%c0_39, %c0_40] : memref<1x128xf32, #tpu.memory_space<vmem>>, vector<1x128xf32>
    %cst_41 = arith.constant dense<0.000000e+00> : vector<16x128xf32>
    %54 = tpu.matmul %51, %52, %cst_41 {dimension_numbers = #tpu.dot_dimension_numbers<[1], [0], [0], [1], [0, 0, 1, 1], [], []>} : vector<16x128xbf16>, vector<128x128xbf16>, vector<16x128xf32> -> vector<16x128xf32>
    %55 = vector.broadcast %53 : vector<1x128xf32> to vector<16x128xf32>
    %56 = arith.addf %54, %55 : vector<16x128xf32>
    %57 = arith.truncf %56 : vector<16x128xf32> to vector<16x128xbf16>
    %c0_42 = arith.constant 0 : index
    %c0_43 = arith.constant 0 : index
    %58 = vector.load %arg17[%c0_42, %c0_43] : memref<16x128xbf16, #tpu.memory_space<vmem>>, vector<16x128xbf16>
    tpu.vector_store %arg17[%c0_42, %c0_43], %57 {strides = array<i32>} : memref<16x128xbf16, #tpu.memory_space<vmem>>, vector<16x128xbf16>,
    %c16_i32 = arith.constant 16 : i32
    %59 = arith.muli %arg0, %c16_i32 : i32
    %60 = tpu.iota {dimensions = array<i32: 0>} : vector<16x128xi32>
    %61 = vector.broadcast %59 : i32 to vector<16x128xi32>
    %62 = arith.addi %61, %60 : vector<16x128xi32>
    %c40_i32 = arith.constant 40 : i32
    %63 = vector.broadcast %c40_i32 : i32 to vector<16x128xi32>
    %64 = arith.cmpi slt, %62, %63 : vector<16x128xi32>
    %c0_44 = arith.constant 0 : index
    %c0_45 = arith.constant 0 : index
    %65 = vector.load %arg2[%c0_44, %c0_45] : memref<1x128xf32, #tpu.memory_space<vmem>>, vector<1x128xf32>
    %66 = vector.broadcast %65 : vector<1x128xf32> to vector<16x128xf32>
    %67 = arith.mulf %56, %66 : vector<16x128xf32>
    %cst_46 = arith.constant 0xFF800000 : f32
    %68 = vector.broadcast %cst_46 : f32 to vector<16x128xf32>
    %69 = arith.select %64, %67, %68 : vector<16x128xi1>, vector<16x128xf32>
    %c0_47 = arith.constant 0 : index
    %c0_48 = arith.constant 0 : index
    %70 = vector.load %arg19[%c0_47, %c0_48] : memref<1x128xf32, #tpu.memory_space<vmem>>, vector<1x128xf32>
    %cst_49 = arith.constant dense<0xFF800000> : vector<128xf32>
    %71 = vector.multi_reduction <maximumf>, %69, %cst_49 [0] : vector<16x128xf32> to vector<128xf32>
    %72 = vector.shape_cast %71 : vector<128xf32> to vector<1x128xf32>
    %73 = arith.maximumf %70, %72 : vector<1x128xf32>
    %c0_50 = arith.constant 0 : index
    %c0_51 = arith.constant 0 : index
    %74 = vector.load %arg19[%c0_50, %c0_51] : memref<1x128xf32, #tpu.memory_space<vmem>>, vector<1x128xf32>
    %75 = arith.subf %74, %73 : vector<1x128xf32>
    %76 = math.exp %75 : vector<1x128xf32>
    %77 = vector.broadcast %73 : vector<1x128xf32> to vector<16x128xf32>
    %78 = arith.subf %69, %77 : vector<16x128xf32>
    %79 = math.exp %78 : vector<16x128xf32>
    %c0_52 = arith.constant 0 : index
    %c0_53 = arith.constant 0 : index
    %80 = vector.load %arg20[%c0_52, %c0_53] : memref<1x128xf32, #tpu.memory_space<vmem>>, vector<1x128xf32>
    %81 = arith.mulf %76, %80 : vector<1x128xf32>
    %cst_54 = arith.constant dense<0.000000e+00> : vector<128xf32>
    %82 = vector.multi_reduction <add>, %79, %cst_54 [0] : vector<16x128xf32> to vector<128xf32>
    %83 = vector.shape_cast %82 : vector<128xf32> to vector<1x128xf32>
    %84 = arith.addf %81, %83 : vector<1x128xf32>
    %c0_55 = arith.constant 0 : index
    %c0_56 = arith.constant 0 : index
    %85 = vector.load %arg20[%c0_55, %c0_56] : memref<1x128xf32, #tpu.memory_space<vmem>>, vector<1x128xf32>
    tpu.vector_store %arg20[%c0_55, %c0_56], %84 {strides = array<i32>} : memref<1x128xf32, #tpu.memory_space<vmem>>, vector<1x128xf32>,
    %c0_57 = arith.constant 0 : index
    %c0_58 = arith.constant 0 : index
    %86 = vector.load %arg21[%c0_57, %c0_58] : memref<1x128xf32, #tpu.memory_space<vmem>>, vector<1x128xf32>
    %87 = arith.mulf %76, %86 : vector<1x128xf32>
    %88 = arith.mulf %56, %79 : vector<16x128xf32>
    %cst_59 = arith.constant dense<0.000000e+00> : vector<128xf32>
    %89 = vector.multi_reduction <add>, %88, %cst_59 [0] : vector<16x128xf32> to vector<128xf32>
    %90 = vector.shape_cast %89 : vector<128xf32> to vector<1x128xf32>
    %91 = arith.addf %87, %90 : vector<1x128xf32>
    %c0_60 = arith.constant 0 : index
    %c0_61 = arith.constant 0 : index
    %92 = vector.load %arg21[%c0_60, %c0_61] : memref<1x128xf32, #tpu.memory_space<vmem>>, vector<1x128xf32>
    tpu.vector_store %arg21[%c0_60, %c0_61], %91 {strides = array<i32>} : memref<1x128xf32, #tpu.memory_space<vmem>>, vector<1x128xf32>,
    %c0_62 = arith.constant 0 : index
    %c0_63 = arith.constant 0 : index
    %93 = vector.load %arg19[%c0_62, %c0_63] : memref<1x128xf32, #tpu.memory_space<vmem>>, vector<1x128xf32>
    tpu.vector_store %arg19[%c0_62, %c0_63], %73 {strides = array<i32>} : memref<1x128xf32, #tpu.memory_space<vmem>>, vector<1x128xf32>,
    %c2_i32 = arith.constant 2 : i32
    %94 = arith.cmpi eq, %arg0, %c2_i32 : i32
    %95 = arith.extui %94 : i1 to i32
    %c0_i32_64 = arith.constant 0 : i32
    %96 = arith.cmpi ne, %95, %c0_i32_64 : i32
    scf.if %96 {
      %c0_65 = arith.constant 0 : index
      %c0_66 = arith.constant 0 : index
      %97 = vector.load %arg21[%c0_65, %c0_66] : memref<1x128xf32, #tpu.memory_space<vmem>>, vector<1x128xf32>
      %c0_67 = arith.constant 0 : index
      %c0_68 = arith.constant 0 : index
      %98 = vector.load %arg20[%c0_67, %c0_68] : memref<1x128xf32, #tpu.memory_space<vmem>>, vector<1x128xf32>
      %99 = arith.divf %97, %98 : vector<1x128xf32>
      %c0_69 = arith.constant 0 : index
      %c0_70 = arith.constant 0 : index
      %100 = vector.load %arg18[%c0_69, %c0_70] : memref<1x128xf32, #tpu.memory_space<vmem>>, vector<1x128xf32>
      tpu.vector_store %arg18[%c0_69, %c0_70], %99 {strides = array<i32>} : memref<1x128xf32, #tpu.memory_space<vmem>>, vector<1x128xf32>,
    } else {
    }
    return
  }
  func.func @transform_0(%arg0: i32) -> (i32, i32) {
    %c0_i32 = arith.constant 0 : i32
    %c0_i32_0 = arith.constant 0 : i32
    return %arg0, %c0_i32 : i32, i32
  }
  func.func @transform_1(%arg0: i32) -> (i32, i32) {
    %c0_i32 = arith.constant 0 : i32
    %c0_i32_0 = arith.constant 0 : i32
    %c0_i32_1 = arith.constant 0 : i32
    return %c0_i32, %c0_i32_0 : i32, i32
  }
  func.func @transform_2(%arg0: i32) -> (i32, i32) {
    %c0_i32 = arith.constant 0 : i32
    %c0_i32_0 = arith.constant 0 : i32
    %c0_i32_1 = arith.constant 0 : i32
    return %c0_i32, %c0_i32_0 : i32, i32
  }
  func.func @transform_3(%arg0: i32) -> (i32, i32) {
    %c0_i32 = arith.constant 0 : i32
    %c0_i32_0 = arith.constant 0 : i32
    %c0_i32_1 = arith.constant 0 : i32
    return %c0_i32, %c0_i32_0 : i32, i32
  }
  func.func @transform_4(%arg0: i32) -> (i32, i32) {
    %c0_i32 = arith.constant 0 : i32
    %c0_i32_0 = arith.constant 0 : i32
    %c0_i32_1 = arith.constant 0 : i32
    return %c0_i32, %c0_i32_0 : i32, i32
  }
  func.func @transform_5(%arg0: i32) -> (i32, i32) {
    %c0_i32 = arith.constant 0 : i32
    %c0_i32_0 = arith.constant 0 : i32
    %c0_i32_1 = arith.constant 0 : i32
    return %c0_i32, %c0_i32_0 : i32, i32
  }
  func.func @transform_6(%arg0: i32) -> (i32, i32) {
    %c0_i32 = arith.constant 0 : i32
    %c0_i32_0 = arith.constant 0 : i32
    %c0_i32_1 = arith.constant 0 : i32
    return %c0_i32, %c0_i32_0 : i32, i32
  }
  func.func @transform_7(%arg0: i32) -> (i32, i32) {
    %c0_i32 = arith.constant 0 : i32
    %c0_i32_0 = arith.constant 0 : i32
    %c0_i32_1 = arith.constant 0 : i32
    return %c0_i32, %c0_i32_0 : i32, i32
  }
  func.func @transform_8(%arg0: i32) -> (i32, i32) {
    %c0_i32 = arith.constant 0 : i32
    %c0_i32_0 = arith.constant 0 : i32
    %c0_i32_1 = arith.constant 0 : i32
    return %c0_i32, %c0_i32_0 : i32, i32
  }
  func.func @transform_9(%arg0: i32) -> (i32, i32) {
    %c0_i32 = arith.constant 0 : i32
    %c0_i32_0 = arith.constant 0 : i32
    %c0_i32_1 = arith.constant 0 : i32
    return %c0_i32, %c0_i32_0 : i32, i32
  }
  func.func @transform_10(%arg0: i32) -> (i32, i32) {
    %c0_i32 = arith.constant 0 : i32
    %c0_i32_0 = arith.constant 0 : i32
    %c0_i32_1 = arith.constant 0 : i32
    return %c0_i32, %c0_i32_0 : i32, i32
  }
  func.func @transform_11(%arg0: i32) -> (i32, i32) {
    %c0_i32 = arith.constant 0 : i32
    %c0_i32_0 = arith.constant 0 : i32
    %c0_i32_1 = arith.constant 0 : i32
    return %c0_i32, %c0_i32_0 : i32, i32
  }
  func.func @transform_12(%arg0: i32) -> (i32, i32) {
    %c0_i32 = arith.constant 0 : i32
    %c0_i32_0 = arith.constant 0 : i32
    %c0_i32_1 = arith.constant 0 : i32
    return %c0_i32, %c0_i32_0 : i32, i32
  }
  func.func @transform_13(%arg0: i32) -> (i32, i32) {
    %c0_i32 = arith.constant 0 : i32
    %c0_i32_0 = arith.constant 0 : i32
    %c0_i32_1 = arith.constant 0 : i32
    return %c0_i32, %c0_i32_0 : i32, i32
  }
  func.func @transform_14(%arg0: i32) -> (i32, i32) {
    %c0_i32 = arith.constant 0 : i32
    %c0_i32_0 = arith.constant 0 : i32
    %c0_i32_1 = arith.constant 0 : i32
    return %c0_i32, %c0_i32_0 : i32, i32
  }
  func.func @transform_15(%arg0: i32) -> (i32, i32) {
    %c0_i32 = arith.constant 0 : i32
    %c0_i32_0 = arith.constant 0 : i32
    %c0_i32_1 = arith.constant 0 : i32
    return %c0_i32, %c0_i32_0 : i32, i32
  }
  func.func @transform_16(%arg0: i32) -> (i32, i32) {
    %c0_i32 = arith.constant 0 : i32
    %c0_i32_0 = arith.constant 0 : i32
    return %arg0, %c0_i32 : i32, i32
  }
  func.func @transform_17(%arg0: i32) -> (i32, i32) {
    %c0_i32 = arith.constant 0 : i32
    %c0_i32_0 = arith.constant 0 : i32
    %c0_i32_1 = arith.constant 0 : i32
    return %c0_i32, %c0_i32_0 : i32, i32
  }
}

</mosaic_0001>

<llo_original>
// kernel: adaptive_pooling_classifier_forward.1
$region0: #{adaptive_pooling_classifier_forward.1}
  #allocation0 [shape = 'u32[]', space=smem, size = 0x4, offset = 0x4, fixed_abs, tag = 'smem constant byte address 0x4 - core index']
  #allocation1 [shape = 'u32[72,128]{1,0:T(1,128)}', space=vmem, size = 0x9000, scoped, tag = 'internal scratch']
  #allocation2 [shape = 'f32[1,128]{1,0:T(1,128)}', space=vmem, size = 0x200, scoped, tag = 'scratch operand']
  #allocation3 [shape = 'f32[1,128]{1,0:T(1,128)}', space=vmem, size = 0x200, scoped, tag = 'scratch operand']
  #allocation4 [shape = 'f32[1,128]{1,0:T(1,128)}', space=vmem, size = 0x200, scoped, tag = 'scratch operand']
  %s0 = inlined_call_operand.vmem [shape: bf16[48,128], index: 0, kind: input, shape index: {}]
  %s1 = inlined_call_operand.vmem [shape: f32[1,128], index: 1, kind: input, shape index: {}]
  %s2 = inlined_call_operand.vmem [shape: bf16[128,128], index: 2, kind: input, shape index: {}]
  %s3 = inlined_call_operand.vmem [shape: f32[1,128], index: 3, kind: input, shape index: {}]
  %s4 = inlined_call_operand.hbm [shape: bf16[128,128], index: 4, kind: input, shape index: {}]
  %s5 = inlined_call_operand.vmem [shape: f32[1,128], index: 5, kind: input, shape index: {}]
  %s6 = inlined_call_operand.hbm [shape: bf16[128,128], index: 6, kind: input, shape index: {}]
  %s7 = inlined_call_operand.vmem [shape: f32[1,128], index: 7, kind: input, shape index: {}]
  %s8 = inlined_call_operand.hbm [shape: bf16[128,128], index: 8, kind: input, shape index: {}]
  %s9 = inlined_call_operand.vmem [shape: f32[1,128], index: 9, kind: input, shape index: {}]
  %s10 = inlined_call_operand.hbm [shape: bf16[128,128], index: 10, kind: input, shape index: {}]
  %s11 = inlined_call_operand.vmem [shape: f32[1,128], index: 11, kind: input, shape index: {}]
  %s12 = inlined_call_operand.hbm [shape: bf16[128,128], index: 12, kind: input, shape index: {}]
  %s13 = inlined_call_operand.vmem [shape: f32[1,128], index: 13, kind: input, shape index: {}]
  %s14 = inlined_call_operand.hbm [shape: bf16[128,128], index: 14, kind: input, shape index: {}]
  %s15 = inlined_call_operand.vmem [shape: f32[1,128], index: 15, kind: input, shape index: {}]
  %s16 = inlined_call_operand.vmem [shape: bf16[48,128], index: 16, kind: output, shape index: {0}]
  %s17 = inlined_call_operand.vmem [shape: f32[1,128], index: 17, kind: output, shape index: {1}]
  %18 = xla_tuple %s16, %s17
  %s19 = sld [smem:[#allocation0]]
  $region137: #{adaptive_pooling_classifier_forward.1} parent=0
    _
  %s21 = ssub.s32 1, %s19
  %s22 = scalar_select 0, %s21, %s19
  $region1: #{adaptive_pooling_classifier_forward.1} parent=0
    #allocation5 [shape = 'u8[32768]{0}', space=vmem, size = 0x8000, scoped, tag = 'input window, operand 4, single buffered']
    #allocation6 [shape = 's32[2]{0}', space=sflag, size = 0x8, scoped, tag = 'scoped memory for adaptive_pooling_classifier_forward.1']
    #allocation7 [shape = 'u8[32768]{0}', space=vmem, size = 0x8000, scoped, tag = 'input window, operand 6, single buffered']
    #allocation8 [shape = 's32[1]{0}', space=sflag, size = 0x4, scoped, tag = 'scoped memory for adaptive_pooling_classifier_forward.1']
    #allocation9 [shape = 'u8[32768]{0}', space=vmem, size = 0x8000, scoped, tag = 'input window, operand 8, single buffered']
    #allocation10 [shape = 'u8[32768]{0}', space=vmem, size = 0x8000, scoped, tag = 'input window, operand 10, single buffered']
    #allocation11 [shape = 's32[1]{0}', space=sflag, size = 0x4, scoped, tag = 'scoped memory for adaptive_pooling_classifier_forward.1']
    #allocation12 [shape = 'u8[32768]{0}', space=vmem, size = 0x8000, scoped, tag = 'input window, operand 12, single buffered']
    #allocation13 [shape = 'u8[32768]{0}', space=vmem, size = 0x8000, scoped, tag = 'input window, operand 14, single buffered']
    #allocation14 [shape = 's32[1]{0}', space=sflag, size = 0x4, scoped, tag = 'scoped memory for adaptive_pooling_classifier_forward.1']
    %23 = vsyncpa [#allocation6], 0
    %24 = vsyncpa [#allocation8], 0
    %25 = vsyncpa [#allocation11], 0
    %26 = vsyncpa [#allocation14], 0
    loop: start=0, step=1, limit=5
    $region2: #{adaptive_pooling_classifier_forward.1} parent=1 // loop_pre_header
      _
    $region3: #{adaptive_pooling_classifier_forward.1} parent=1 // loop_header
      %s28 = sphi 0, %s32
      %p29 = scmp.ge.s32.totalorder %s28, 5
      %s38 = sphi 0, %s40
      %s41 = sphi 0, %s38
      %s42 = sphi 0, %s41
      %s58 = sphi 0, %s42
      %s62 = sphi 0, %s62
      %s64 = sphi 0, %s62
      %s65 = sphi 0, %s64
      %s79 = sphi 0, %s65
      %s83 = sphi 0, %s83
      %s85 = sphi 0, %s83
      %s86 = sphi 0, %s85
      %s100 = sphi 0, %s86
      %s104 = sphi 0, %s104
      %s106 = sphi 0, %s104
      %s107 = sphi 0, %s106
      %s121 = sphi 0, %s107
      %s125 = sphi 0, %s125
      %s127 = sphi 0, %s125
      %s128 = sphi 0, %s127
      %s142 = sphi 0, %s128
      %s146 = sphi 0, %s146
      %s148 = sphi 0, %s146
      %s149 = sphi 0, %s148
      %s163 = sphi 0, %s149
      %s167 = sphi 0, %s167
      %s169 = sphi 0, %s167
      %s170 = sphi 0, %s169
      %s184 = sphi 0, %s170
      %s188 = sphi 0, %s188
      %s190 = sphi 0, %s188
      %s191 = sphi 0, %s190
      %s205 = sphi 0, %s191
      %s209 = sphi 0, %s209
      %s211 = sphi 0, %s209
      %s212 = sphi 0, %s211
      %s226 = sphi 0, %s212
      %s230 = sphi 0, %s230
      %s232 = sphi 0, %s230
      %s233 = sphi 0, %s232
      %s247 = sphi 0, %s233
      %s251 = sphi 0, %s251
      %s253 = sphi 0, %s251
      %s254 = sphi 0, %s253
      %s268 = sphi 0, %s254
      %s272 = sphi 0, %s272
      %s274 = sphi 0, %s272
      %s275 = sphi 0, %s274
      %s289 = sphi 0, %s275
      %s293 = sphi 0, %s293
      %s295 = sphi 0, %s293
      %s296 = sphi 0, %s295
      %s310 = sphi 0, %s296
      %s314 = sphi 0, %s314
      %s316 = sphi 0, %s314
      %s317 = sphi 0, %s316
      %s331 = sphi 0, %s317
      %s335 = sphi 0, %s335
      %s337 = sphi 0, %s335
      %s338 = sphi 0, %s337
      %s352 = sphi 0, %s338
      %s356 = sphi 0, %s356
      %s358 = sphi 0, %s356
      %s359 = sphi 0, %s358
      %s373 = sphi 0, %s359
      %s379 = sphi 0, %s381
      %s382 = sphi 0, %s379
      %s383 = sphi 0, %s382
      %s399 = sphi 0, %s383
      %s403 = sphi 0, %s403
      %s405 = sphi 0, %s403
      %s406 = sphi 0, %s405
      %s420 = sphi 0, %s406
    $region4: #{adaptive_pooling_classifier_forward.1} parent=1 // loop_header_branch
      %31 = sbr.rel (%p29) target = $region8
    $region5: #{adaptive_pooling_classifier_forward.1} parent=1 // loop_body
      %s33 = ssub.s32 %s28, 1
      %s34 = ssub.s32 %s28, 2
      %s35 = sadd.s32 %s28, 1
      %s36 = ssub.s32 %s28, %s35
      %p37 = scmp.eq.s32.totalorder %s36, 0
      %s39 = sadd.s32 %s38, 1
      %s40 = scalar_select %p37, %s38, %s39
      %p43 = pneg %p37
      %p44 = scmp.eq.s32.totalorder %s28, 2
      %p45 = por %p43, %p44
      %p46 = scmp.ne.s32.totalorder %s38, %s41
      %p47 = scmp.eq.s32.totalorder %s28, 0
      %p48 = por %p46, %p47
      %p49 = scmp.ne.s32.totalorder %s38, %s41
      %p50 = scmp.eq.s32.totalorder %s33, 2
      %p51 = por %p49, %p50
      %p52 = scmp.ne.s32.totalorder %s41, %s42
      %p53 = scmp.eq.s32.totalorder %s33, 0
      %p54 = por %p52, %p53
      %p55 = scmp.ne.s32.totalorder %s41, %s42
      %p56 = scmp.eq.s32.totalorder %s34, 2
      %p57 = por %p55, %p56
      %p59 = scmp.ne.s32.totalorder %s42, %s58
      %p60 = scmp.eq.s32.totalorder %s34, 0
      %p61 = por %p59, %p60
      %s63 = sadd.s32 %s62, 1
      %p66 = scmp.eq.s32.totalorder %s28, 2
      %p67 = scmp.ne.s32.totalorder %s62, %s64
      %p68 = scmp.eq.s32.totalorder %s28, 0
      %p69 = por %p67, %p68
      %p70 = scmp.ne.s32.totalorder %s62, %s64
      %p71 = scmp.eq.s32.totalorder %s33, 2
      %p72 = por %p70, %p71
      %p73 = scmp.ne.s32.totalorder %s64, %s65
      %p74 = scmp.eq.s32.totalorder %s33, 0
      %p75 = por %p73, %p74
      %p76 = scmp.ne.s32.totalorder %s64, %s65
      %p77 = scmp.eq.s32.totalorder %s34, 2
      %p78 = por %p76, %p77
      %p80 = scmp.ne.s32.totalorder %s65, %s79
      %p81 = scmp.eq.s32.totalorder %s34, 0
      %p82 = por %p80, %p81
      %s84 = sadd.s32 %s83, 1
      %p87 = scmp.eq.s32.totalorder %s28, 2
      %p88 = scmp.ne.s32.totalorder %s83, %s85
      %p89 = scmp.eq.s32.totalorder %s28, 0
      %p90 = por %p88, %p89
      %p91 = scmp.ne.s32.totalorder %s83, %s85
      %p92 = scmp.eq.s32.totalorder %s33, 2
      %p93 = por %p91, %p92
      %p94 = scmp.ne.s32.totalorder %s85, %s86
      %p95 = scmp.eq.s32.totalorder %s33, 0
      %p96 = por %p94, %p95
      %p97 = scmp.ne.s32.totalorder %s85, %s86
      %p98 = scmp.eq.s32.totalorder %s34, 2
      %p99 = por %p97, %p98
      %p101 = scmp.ne.s32.totalorder %s86, %s100
      %p102 = scmp.eq.s32.totalorder %s34, 0
      %p103 = por %p101, %p102
      %s105 = sadd.s32 %s104, 1
      %p108 = scmp.eq.s32.totalorder %s28, 2
      %p109 = scmp.ne.s32.totalorder %s104, %s106
      %p110 = scmp.eq.s32.totalorder %s28, 0
      %p111 = por %p109, %p110
      %p112 = scmp.ne.s32.totalorder %s104, %s106
      %p113 = scmp.eq.s32.totalorder %s33, 2
      %p114 = por %p112, %p113
      %p115 = scmp.ne.s32.totalorder %s106, %s107
      %p116 = scmp.eq.s32.totalorder %s33, 0
      %p117 = por %p115, %p116
      %p118 = scmp.ne.s32.totalorder %s106, %s107
      %p119 = scmp.eq.s32.totalorder %s34, 2
      %p120 = por %p118, %p119
      %p122 = scmp.ne.s32.totalorder %s107, %s121
      %p123 = scmp.eq.s32.totalorder %s34, 0
      %p124 = por %p122, %p123
      %s126 = sadd.s32 %s125, 1
      %p129 = scmp.eq.s32.totalorder %s28, 2
      %p130 = scmp.ne.s32.totalorder %s125, %s127
      %p131 = scmp.eq.s32.totalorder %s28, 0
      %p132 = por %p130, %p131
      %p133 = scmp.ne.s32.totalorder %s125, %s127
      %p134 = scmp.eq.s32.totalorder %s33, 2
      %p135 = por %p133, %p134
      %p136 = scmp.ne.s32.totalorder %s127, %s128
      %p137 = scmp.eq.s32.totalorder %s33, 0
      %p138 = por %p136, %p137
      %p139 = scmp.ne.s32.totalorder %s127, %s128
      %p140 = scmp.eq.s32.totalorder %s34, 2
      %p141 = por %p139, %p140
      %p143 = scmp.ne.s32.totalorder %s128, %s142
      %p144 = scmp.eq.s32.totalorder %s34, 0
      %p145 = por %p143, %p144
      %s147 = sadd.s32 %s146, 1
      %p150 = scmp.eq.s32.totalorder %s28, 2
      %p151 = scmp.ne.s32.totalorder %s146, %s148
      %p152 = scmp.eq.s32.totalorder %s28, 0
      %p153 = por %p151, %p152
      %p154 = scmp.ne.s32.totalorder %s146, %s148
      %p155 = scmp.eq.s32.totalorder %s33, 2
      %p156 = por %p154, %p155
      %p157 = scmp.ne.s32.totalorder %s148, %s149
      %p158 = scmp.eq.s32.totalorder %s33, 0
      %p159 = por %p157, %p158
      %p160 = scmp.ne.s32.totalorder %s148, %s149
      %p161 = scmp.eq.s32.totalorder %s34, 2
      %p162 = por %p160, %p161
      %p164 = scmp.ne.s32.totalorder %s149, %s163
      %p165 = scmp.eq.s32.totalorder %s34, 0
      %p166 = por %p164, %p165
      %s168 = sadd.s32 %s167, 1
      %p171 = scmp.eq.s32.totalorder %s28, 2
      %p172 = scmp.ne.s32.totalorder %s167, %s169
      %p173 = scmp.eq.s32.totalorder %s28, 0
      %p174 = por %p172, %p173
      %p175 = scmp.ne.s32.totalorder %s167, %s169
      %p176 = scmp.eq.s32.totalorder %s33, 2
      %p177 = por %p175, %p176
      %p178 = scmp.ne.s32.totalorder %s169, %s170
      %p179 = scmp.eq.s32.totalorder %s33, 0
      %p180 = por %p178, %p179
      %p181 = scmp.ne.s32.totalorder %s169, %s170
      %p182 = scmp.eq.s32.totalorder %s34, 2
      %p183 = por %p181, %p182
      %p185 = scmp.ne.s32.totalorder %s170, %s184
      %p186 = scmp.eq.s32.totalorder %s34, 0
      %p187 = por %p185, %p186
      %s189 = sadd.s32 %s188, 1
      %p192 = scmp.eq.s32.totalorder %s28, 2
      %p193 = scmp.ne.s32.totalorder %s188, %s190
      %p194 = scmp.eq.s32.totalorder %s28, 0
      %p195 = por %p193, %p194
      %p196 = scmp.ne.s32.totalorder %s188, %s190
      %p197 = scmp.eq.s32.totalorder %s33, 2
      %p198 = por %p196, %p197
      %p199 = scmp.ne.s32.totalorder %s190, %s191
      %p200 = scmp.eq.s32.totalorder %s33, 0
      %p201 = por %p199, %p200
      %p202 = scmp.ne.s32.totalorder %s190, %s191
      %p203 = scmp.eq.s32.totalorder %s34, 2
      %p204 = por %p202, %p203
      %p206 = scmp.ne.s32.totalorder %s191, %s205
      %p207 = scmp.eq.s32.totalorder %s34, 0
      %p208 = por %p206, %p207
      %s210 = sadd.s32 %s209, 1
      %p213 = scmp.eq.s32.totalorder %s28, 2
      %p214 = scmp.ne.s32.totalorder %s209, %s211
      %p215 = scmp.eq.s32.totalorder %s28, 0
      %p216 = por %p214, %p215
      %p217 = scmp.ne.s32.totalorder %s209, %s211
      %p218 = scmp.eq.s32.totalorder %s33, 2
      %p219 = por %p217, %p218
      %p220 = scmp.ne.s32.totalorder %s211, %s212
      %p221 = scmp.eq.s32.totalorder %s33, 0
      %p222 = por %p220, %p221
      %p223 = scmp.ne.s32.totalorder %s211, %s212
      %p224 = scmp.eq.s32.totalorder %s34, 2
      %p225 = por %p223, %p224
      %p227 = scmp.ne.s32.totalorder %s212, %s226
      %p228 = scmp.eq.s32.totalorder %s34, 0
      %p229 = por %p227, %p228
      %s231 = sadd.s32 %s230, 1
      %p234 = scmp.eq.s32.totalorder %s28, 2
      %p235 = scmp.ne.s32.totalorder %s230, %s232
      %p236 = scmp.eq.s32.totalorder %s28, 0
      %p237 = por %p235, %p236
      %p238 = scmp.ne.s32.totalorder %s230, %s232
      %p239 = scmp.eq.s32.totalorder %s33, 2
      %p240 = por %p238, %p239
      %p241 = scmp.ne.s32.totalorder %s232, %s233
      %p242 = scmp.eq.s32.totalorder %s33, 0
      %p243 = por %p241, %p242
      %p244 = scmp.ne.s32.totalorder %s232, %s233
      %p245 = scmp.eq.s32.totalorder %s34, 2
      %p246 = por %p244, %p245
      %p248 = scmp.ne.s32.totalorder %s233, %s247
      %p249 = scmp.eq.s32.totalorder %s34, 0
      %p250 = por %p248, %p249
      %s252 = sadd.s32 %s251, 1
      %p255 = scmp.eq.s32.totalorder %s28, 2
      %p256 = scmp.ne.s32.totalorder %s251, %s253
      %p257 = scmp.eq.s32.totalorder %s28, 0
      %p258 = por %p256, %p257
      %p259 = scmp.ne.s32.totalorder %s251, %s253
      %p260 = scmp.eq.s32.totalorder %s33, 2
      %p261 = por %p259, %p260
      %p262 = scmp.ne.s32.totalorder %s253, %s254
      %p263 = scmp.eq.s32.totalorder %s33, 0
      %p264 = por %p262, %p263
      %p265 = scmp.ne.s32.totalorder %s253, %s254
      %p266 = scmp.eq.s32.totalorder %s34, 2
      %p267 = por %p265, %p266
      %p269 = scmp.ne.s32.totalorder %s254, %s268
      %p270 = scmp.eq.s32.totalorder %s34, 0
      %p271 = por %p269, %p270
      %s273 = sadd.s32 %s272, 1
      %p276 = scmp.eq.s32.totalorder %s28, 2
      %p277 = scmp.ne.s32.totalorder %s272, %s274
      %p278 = scmp.eq.s32.totalorder %s28, 0
      %p279 = por %p277, %p278
      %p280 = scmp.ne.s32.totalorder %s272, %s274
      %p281 = scmp.eq.s32.totalorder %s33, 2
      %p282 = por %p280, %p281
      %p283 = scmp.ne.s32.totalorder %s274, %s275
      %p284 = scmp.eq.s32.totalorder %s33, 0
      %p285 = por %p283, %p284
      %p286 = scmp.ne.s32.totalorder %s274, %s275
      %p287 = scmp.eq.s32.totalorder %s34, 2
      %p288 = por %p286, %p287
      %p290 = scmp.ne.s32.totalorder %s275, %s289
      %p291 = scmp.eq.s32.totalorder %s34, 0
      %p292 = por %p290, %p291
      %s294 = sadd.s32 %s293, 1
      %p297 = scmp.eq.s32.totalorder %s28, 2
      %p298 = scmp.ne.s32.totalorder %s293, %s295
      %p299 = scmp.eq.s32.totalorder %s28, 0
      %p300 = por %p298, %p299
      %p301 = scmp.ne.s32.totalorder %s293, %s295
      %p302 = scmp.eq.s32.totalorder %s33, 2
      %p303 = por %p301, %p302
      %p304 = scmp.ne.s32.totalorder %s295, %s296
      %p305 = scmp.eq.s32.totalorder %s33, 0
      %p306 = por %p304, %p305
      %p307 = scmp.ne.s32.totalorder %s295, %s296
      %p308 = scmp.eq.s32.totalorder %s34, 2
      %p309 = por %p307, %p308
      %p311 = scmp.ne.s32.totalorder %s296, %s310
      %p312 = scmp.eq.s32.totalorder %s34, 0
      %p313 = por %p311, %p312
      %s315 = sadd.s32 %s314, 1
      %p318 = scmp.eq.s32.totalorder %s28, 2
      %p319 = scmp.ne.s32.totalorder %s314, %s316
      %p320 = scmp.eq.s32.totalorder %s28, 0
      %p321 = por %p319, %p320
      %p322 = scmp.ne.s32.totalorder %s314, %s316
      %p323 = scmp.eq.s32.totalorder %s33, 2
      %p324 = por %p322, %p323
      %p325 = scmp.ne.s32.totalorder %s316, %s317
      %p326 = scmp.eq.s32.totalorder %s33, 0
      %p327 = por %p325, %p326
      %p328 = scmp.ne.s32.totalorder %s316, %s317
      %p329 = scmp.eq.s32.totalorder %s34, 2
      %p330 = por %p328, %p329
      %p332 = scmp.ne.s32.totalorder %s317, %s331
      %p333 = scmp.eq.s32.totalorder %s34, 0
      %p334 = por %p332, %p333
      %s336 = sadd.s32 %s335, 1
      %p339 = scmp.eq.s32.totalorder %s28, 2
      %p340 = scmp.ne.s32.totalorder %s335, %s337
      %p341 = scmp.eq.s32.totalorder %s28, 0
      %p342 = por %p340, %p341
      %p343 = scmp.ne.s32.totalorder %s335, %s337
      %p344 = scmp.eq.s32.totalorder %s33, 2
      %p345 = por %p343, %p344
      %p346 = scmp.ne.s32.totalorder %s337, %s338
      %p347 = scmp.eq.s32.totalorder %s33, 0
      %p348 = por %p346, %p347
      %p349 = scmp.ne.s32.totalorder %s337, %s338
      %p350 = scmp.eq.s32.totalorder %s34, 2
      %p351 = por %p349, %p350
      %p353 = scmp.ne.s32.totalorder %s338, %s352
      %p354 = scmp.eq.s32.totalorder %s34, 0
      %p355 = por %p353, %p354
      %s357 = sadd.s32 %s356, 1
      %p360 = scmp.eq.s32.totalorder %s28, 2
      %p361 = scmp.ne.s32.totalorder %s356, %s358
      %p362 = scmp.eq.s32.totalorder %s28, 0
      %p363 = por %p361, %p362
      %p364 = scmp.ne.s32.totalorder %s356, %s358
      %p365 = scmp.eq.s32.totalorder %s33, 2
      %p366 = por %p364, %p365
      %p367 = scmp.ne.s32.totalorder %s358, %s359
      %p368 = scmp.eq.s32.totalorder %s33, 0
      %p369 = por %p367, %p368
      %p370 = scmp.ne.s32.totalorder %s358, %s359
      %p371 = scmp.eq.s32.totalorder %s34, 2
      %p372 = por %p370, %p371
      %p374 = scmp.ne.s32.totalorder %s359, %s373
      %p375 = scmp.eq.s32.totalorder %s34, 0
      %p376 = por %p374, %p375
      %s377 = ssub.s32 %s28, %s35
      %p378 = scmp.eq.s32.totalorder %s377, 0
      %s380 = sadd.s32 %s379, 1
      %s381 = scalar_select %p378, %s379, %s380
      %p384 = pneg %p378
      %p385 = scmp.eq.s32.totalorder %s28, 2
      %p386 = por %p384, %p385
      %p387 = scmp.ne.s32.totalorder %s379, %s382
      %p388 = scmp.eq.s32.totalorder %s28, 0
      %p389 = por %p387, %p388
      %p390 = scmp.ne.s32.totalorder %s379, %s382
      %p391 = scmp.eq.s32.totalorder %s33, 2
      %p392 = por %p390, %p391
      %p393 = scmp.ne.s32.totalorder %s382, %s383
      %p394 = scmp.eq.s32.totalorder %s33, 0
      %p395 = por %p393, %p394
      %p396 = scmp.ne.s32.totalorder %s382, %s383
      %p397 = scmp.eq.s32.totalorder %s34, 2
      %p398 = por %p396, %p397
      %p400 = scmp.ne.s32.totalorder %s383, %s399
      %p401 = scmp.eq.s32.totalorder %s34, 0
      %p402 = por %p400, %p401
      %s404 = sadd.s32 %s403, 1
      %p407 = scmp.eq.s32.totalorder %s28, 2
      %p408 = scmp.ne.s32.totalorder %s403, %s405
      %p409 = scmp.eq.s32.totalorder %s28, 0
      %p410 = por %p408, %p409
      %p411 = scmp.ne.s32.totalorder %s403, %s405
      %p412 = scmp.eq.s32.totalorder %s33, 2
      %p413 = por %p411, %p412
      %p414 = scmp.ne.s32.totalorder %s405, %s406
      %p415 = scmp.eq.s32.totalorder %s33, 0
      %p416 = por %p414, %p415
      %p417 = scmp.ne.s32.totalorder %s405, %s406
      %p418 = scmp.eq.s32.totalorder %s34, 2
      %p419 = por %p417, %p418
      %p421 = scmp.ne.s32.totalorder %s406, %s420
      %p422 = scmp.eq.s32.totalorder %s34, 0
      %p423 = por %p421, %p422
      %p424 = scmp.le.s32.totalorder 1, %s28
      %p425 = scmp.lt.s32.totalorder %s28, 4
      %p426 = pnand %p424, %p425
      %p427 = pneg %p426
      // Predicated region
      $region9: #{adaptive_pooling_classifier_forward.1} parent=5 // pred_check
        _
      $region10: #{adaptive_pooling_classifier_forward.1} parent=5 // pred_check_branch
        %429 = sbr.rel (%p426) target = $region12
      $region11: #{adaptive_pooling_classifier_forward.1} parent=5 // pred_region
        %s430 = ssub.s32 %s28, 1
        // Predicated region
        $region13: #{adaptive_pooling_classifier_forward.1} parent=11 // pred_check
          %p431 = pneg %p75
        $region14: #{adaptive_pooling_classifier_forward.1} parent=11 // pred_check_branch
          %433 = sbr.rel (%p431) target = $region16
        $region15: #{adaptive_pooling_classifier_forward.1} parent=11 // pred_region
          _
        $region16: #{adaptive_pooling_classifier_forward.1} parent=11 // pred_fallthru
          _
        // Predicated region
        $region17: #{adaptive_pooling_classifier_forward.1} parent=11 // pred_check
          %p434 = pneg %p96
        $region18: #{adaptive_pooling_classifier_forward.1} parent=11 // pred_check_branch
          %436 = sbr.rel (%p434) target = $region20
        $region19: #{adaptive_pooling_classifier_forward.1} parent=11 // pred_region
          _
        $region20: #{adaptive_pooling_classifier_forward.1} parent=11 // pred_fallthru
          _
        // Predicated region
        $region21: #{adaptive_pooling_classifier_forward.1} parent=11 // pred_check
          %p437 = pneg %p117
        $region22: #{adaptive_pooling_classifier_forward.1} parent=11 // pred_check_branch
          %439 = sbr.rel (%p437) target = $region24
        $region23: #{adaptive_pooling_classifier_forward.1} parent=11 // pred_region
          _
        $region24: #{adaptive_pooling_classifier_forward.1} parent=11 // pred_fallthru
          _
        // Predicated region
        $region25: #{adaptive_pooling_classifier_forward.1} parent=11 // pred_check
          %p440 = pneg %p138
        $region26: #{adaptive_pooling_classifier_forward.1} parent=11 // pred_check_branch
          %442 = sbr.rel (%p440) target = $region28
        $region27: #{adaptive_pooling_classifier_forward.1} parent=11 // pred_region
          %444 = vsyncadd [#allocation6], 0
          %s445 = sshll.u32 %s4, 4
          %s446 = int_to_ptr.hbm [resolvable:$true] %s445
          %s447 = sshll.u32 [#allocation5], 4
          %s448 = int_to_ptr.vmem [resolvable:$true] %s447
          %453 = dma.hbm_to_vmem [thread:$0]  %s446, 1024, %s448, [#allocation6], 64, 64, 4
        $region28: #{adaptive_pooling_classifier_forward.1} parent=11 // pred_fallthru
          _
        // Predicated region
        $region29: #{adaptive_pooling_classifier_forward.1} parent=11 // pred_check
          %p454 = pneg %p159
        $region30: #{adaptive_pooling_classifier_forward.1} parent=11 // pred_check_branch
          %456 = sbr.rel (%p454) target = $region32
        $region31: #{adaptive_pooling_classifier_forward.1} parent=11 // pred_region
          _
        $region32: #{adaptive_pooling_classifier_forward.1} parent=11 // pred_fallthru
          _
        // Predicated region
        $region33: #{adaptive_pooling_classifier_forward.1} parent=11 // pred_check
          %p457 = pneg %p180
        $region34: #{adaptive_pooling_classifier_forward.1} parent=11 // pred_check_branch
          %459 = sbr.rel (%p457) target = $region36
        $region35: #{adaptive_pooling_classifier_forward.1} parent=11 // pred_region
          %461 = vsyncadd [#allocation8], 0
          %s462 = sshll.u32 %s6, 4
          %s463 = int_to_ptr.hbm [resolvable:$true] %s462
          %s464 = sshll.u32 [#allocation7], 4
          %s465 = int_to_ptr.vmem [resolvable:$true] %s464
          %470 = dma.hbm_to_vmem [thread:$0]  %s463, 1024, %s465, [#allocation8], 64, 64, 4
        $region36: #{adaptive_pooling_classifier_forward.1} parent=11 // pred_fallthru
          _
        // Predicated region
        $region37: #{adaptive_pooling_classifier_forward.1} parent=11 // pred_check
          %p471 = pneg %p201
        $region38: #{adaptive_pooling_classifier_forward.1} parent=11 // pred_check_branch
          %473 = sbr.rel (%p471) target = $region40
        $region39: #{adaptive_pooling_classifier_forward.1} parent=11 // pred_region
          _
        $region40: #{adaptive_pooling_classifier_forward.1} parent=11 // pred_fallthru
          _
        // Predicated region
        $region41: #{adaptive_pooling_classifier_forward.1} parent=11 // pred_check
          %p474 = pneg %p222
        $region42: #{adaptive_pooling_classifier_forward.1} parent=11 // pred_check_branch
          %476 = sbr.rel (%p474) target = $region44
        $region43: #{adaptive_pooling_classifier_forward.1} parent=11 // pred_region
          %478 = vsyncadd [#allocation8], 0
          %s479 = sshll.u32 %s8, 4
          %s480 = int_to_ptr.hbm [resolvable:$true] %s479
          %s481 = sshll.u32 [#allocation9], 4
          %s482 = int_to_ptr.vmem [resolvable:$true] %s481
          %487 = dma.hbm_to_vmem [thread:$0]  %s480, 1024, %s482, [#allocation8], 64, 64, 4
        $region44: #{adaptive_pooling_classifier_forward.1} parent=11 // pred_fallthru
          _
        // Predicated region
        $region45: #{adaptive_pooling_classifier_forward.1} parent=11 // pred_check
          %p488 = pneg %p243
        $region46: #{adaptive_pooling_classifier_forward.1} parent=11 // pred_check_branch
          %490 = sbr.rel (%p488) target = $region48
        $region47: #{adaptive_pooling_classifier_forward.1} parent=11 // pred_region
          _
        $region48: #{adaptive_pooling_classifier_forward.1} parent=11 // pred_fallthru
          _
        // Predicated region
        $region49: #{adaptive_pooling_classifier_forward.1} parent=11 // pred_check
          %p491 = pneg %p264
        $region50: #{adaptive_pooling_classifier_forward.1} parent=11 // pred_check_branch
          %493 = sbr.rel (%p491) target = $region52
        $region51: #{adaptive_pooling_classifier_forward.1} parent=11 // pred_region
          %495 = vsyncadd [#allocation11], 0
          %s496 = sshll.u32 %s10, 4
          %s497 = int_to_ptr.hbm [resolvable:$true] %s496
          %s498 = sshll.u32 [#allocation10], 4
          %s499 = int_to_ptr.vmem [resolvable:$true] %s498
          %504 = dma.hbm_to_vmem [thread:$0]  %s497, 1024, %s499, [#allocation11], 64, 64, 4
        $region52: #{adaptive_pooling_classifier_forward.1} parent=11 // pred_fallthru
          _
        // Predicated region
        $region53: #{adaptive_pooling_classifier_forward.1} parent=11 // pred_check
          %p505 = pneg %p285
        $region54: #{adaptive_pooling_classifier_forward.1} parent=11 // pred_check_branch
          %507 = sbr.rel (%p505) target = $region56
        $region55: #{adaptive_pooling_classifier_forward.1} parent=11 // pred_region
          _
        $region56: #{adaptive_pooling_classifier_forward.1} parent=11 // pred_fallthru
          _
        // Predicated region
        $region57: #{adaptive_pooling_classifier_forward.1} parent=11 // pred_check
          %p508 = pneg %p306
        $region58: #{adaptive_pooling_classifier_forward.1} parent=11 // pred_check_branch
          %510 = sbr.rel (%p508) target = $region60
        $region59: #{adaptive_pooling_classifier_forward.1} parent=11 // pred_region
          %512 = vsyncadd [#allocation11], 0
          %s513 = sshll.u32 %s12, 4
          %s514 = int_to_ptr.hbm [resolvable:$true] %s513
          %s515 = sshll.u32 [#allocation12], 4
          %s516 = int_to_ptr.vmem [resolvable:$true] %s515
          %521 = dma.hbm_to_vmem [thread:$0]  %s514, 1024, %s516, [#allocation11], 64, 64, 4
        $region60: #{adaptive_pooling_classifier_forward.1} parent=11 // pred_fallthru
          _
        // Predicated region
        $region61: #{adaptive_pooling_classifier_forward.1} parent=11 // pred_check
          %p522 = pneg %p327
        $region62: #{adaptive_pooling_classifier_forward.1} parent=11 // pred_check_branch
          %524 = sbr.rel (%p522) target = $region64
        $region63: #{adaptive_pooling_classifier_forward.1} parent=11 // pred_region
          _
        $region64: #{adaptive_pooling_classifier_forward.1} parent=11 // pred_fallthru
          _
        // Predicated region
        $region65: #{adaptive_pooling_classifier_forward.1} parent=11 // pred_check
          %p525 = pneg %p348
        $region66: #{adaptive_pooling_classifier_forward.1} parent=11 // pred_check_branch
          %527 = sbr.rel (%p525) target = $region68
        $region67: #{adaptive_pooling_classifier_forward.1} parent=11 // pred_region
          %529 = vsyncadd [#allocation14], 0
          %s530 = sshll.u32 %s14, 4
          %s531 = int_to_ptr.hbm [resolvable:$true] %s530
          %s532 = sshll.u32 [#allocation13], 4
          %s533 = int_to_ptr.vmem [resolvable:$true] %s532
          %538 = dma.hbm_to_vmem [thread:$0]  %s531, 1024, %s533, [#allocation14], 64, 64, 4
        $region68: #{adaptive_pooling_classifier_forward.1} parent=11 // pred_fallthru
          _
        // Predicated region
        $region69: #{adaptive_pooling_classifier_forward.1} parent=11 // pred_check
          %p539 = pneg %p369
        $region70: #{adaptive_pooling_classifier_forward.1} parent=11 // pred_check_branch
          %541 = sbr.rel (%p539) target = $region72
        $region71: #{adaptive_pooling_classifier_forward.1} parent=11 // pred_region
          _
        $region72: #{adaptive_pooling_classifier_forward.1} parent=11 // pred_fallthru
          _
      $region12: #{adaptive_pooling_classifier_forward.1} parent=5 // pred_fallthru
        _
      %p542 = scmp.lt.s32.totalorder %s28, 3
      // Predicated region
      $region73: #{adaptive_pooling_classifier_forward.1} parent=5 // pred_check
        %p543 = pneg %p542
      $region74: #{adaptive_pooling_classifier_forward.1} parent=5 // pred_check_branch
        %545 = sbr.rel (%p543) target = $region76
      $region75: #{adaptive_pooling_classifier_forward.1} parent=5 // pred_region
        // Predicated region
        $region77: #{adaptive_pooling_classifier_forward.1} parent=75 // pred_check
          %p546 = pneg %p48
        $region78: #{adaptive_pooling_classifier_forward.1} parent=75 // pred_check_branch
          %548 = sbr.rel (%p546) target = $region80
        $region79: #{adaptive_pooling_classifier_forward.1} parent=75 // pred_region
          %s549 = smul.u32 2, %s28
          %p550 = scmp.lt.s32.totalorder %s549, 5
          %s551 = scalar_select %p550, %s549, 5
          %s552 = smul.addr %s551, 4
          %s553 = scalar_lea.vmem %s0, %s552
          %s554 = smul.u32 2, %s28
        $region80: #{adaptive_pooling_classifier_forward.1} parent=75 // pred_fallthru
          _
      $region76: #{adaptive_pooling_classifier_forward.1} parent=5 // pred_fallthru
        _
      %p555 = scmp.le.s32.totalorder 1, %s28
      %p556 = scmp.lt.s32.totalorder %s28, 4
      %p557 = pnand %p555, %p556
      %p558 = pneg %p557
      // Predicated region
      $region81: #{adaptive_pooling_classifier_forward.1} parent=5 // pred_check
        _
      $region82: #{adaptive_pooling_classifier_forward.1} parent=5 // pred_check_branch
        %560 = sbr.rel (%p557) target = $region84
      $region83: #{adaptive_pooling_classifier_forward.1} parent=5 // pred_region
        %s561 = ssub.s32 %s28, 1
        // Predicated region
        $region85: #{adaptive_pooling_classifier_forward.1} parent=83 // pred_check
          %p562 = pneg %p138
        $region86: #{adaptive_pooling_classifier_forward.1} parent=83 // pred_check_branch
          %564 = sbr.rel (%p562) target = $region88
        $region87: #{adaptive_pooling_classifier_forward.1} parent=83 // pred_region
          %566 = dma.done [#allocation6], 1024
        $region88: #{adaptive_pooling_classifier_forward.1} parent=83 // pred_fallthru
          _
        // Predicated region
        $region89: #{adaptive_pooling_classifier_forward.1} parent=83 // pred_check
          %p567 = pneg %p180
        $region90: #{adaptive_pooling_classifier_forward.1} parent=83 // pred_check_branch
          %569 = sbr.rel (%p567) target = $region92
        $region91: #{adaptive_pooling_classifier_forward.1} parent=83 // pred_region
          %571 = dma.done [#allocation8], 1024
        $region92: #{adaptive_pooling_classifier_forward.1} parent=83 // pred_fallthru
          _
        // Predicated region
        $region93: #{adaptive_pooling_classifier_forward.1} parent=83 // pred_check
          %p572 = pneg %p222
        $region94: #{adaptive_pooling_classifier_forward.1} parent=83 // pred_check_branch
          %574 = sbr.rel (%p572) target = $region96
        $region95: #{adaptive_pooling_classifier_forward.1} parent=83 // pred_region
          %576 = dma.done [#allocation8], 1024
        $region96: #{adaptive_pooling_classifier_forward.1} parent=83 // pred_fallthru
          _
        // Predicated region
        $region97: #{adaptive_pooling_classifier_forward.1} parent=83 // pred_check
          %p577 = pneg %p264
        $region98: #{adaptive_pooling_classifier_forward.1} parent=83 // pred_check_branch
          %579 = sbr.rel (%p577) target = $region100
        $region99: #{adaptive_pooling_classifier_forward.1} parent=83 // pred_region
          %581 = dma.done [#allocation11], 1024
        $region100: #{adaptive_pooling_classifier_forward.1} parent=83 // pred_fallthru
          _
        // Predicated region
        $region101: #{adaptive_pooling_classifier_forward.1} parent=83 // pred_check
          %p582 = pneg %p306
        $region102: #{adaptive_pooling_classifier_forward.1} parent=83 // pred_check_branch
          %584 = sbr.rel (%p582) target = $region104
        $region103: #{adaptive_pooling_classifier_forward.1} parent=83 // pred_region
          %586 = dma.done [#allocation11], 1024
        $region104: #{adaptive_pooling_classifier_forward.1} parent=83 // pred_fallthru
          _
        // Predicated region
        $region105: #{adaptive_pooling_classifier_forward.1} parent=83 // pred_check
          %p587 = pneg %p348
        $region106: #{adaptive_pooling_classifier_forward.1} parent=83 // pred_check_branch
          %589 = sbr.rel (%p587) target = $region108
        $region107: #{adaptive_pooling_classifier_forward.1} parent=83 // pred_region
          %591 = dma.done [#allocation14], 1024
        $region108: #{adaptive_pooling_classifier_forward.1} parent=83 // pred_fallthru
          _
        %s592 = smul.u32 2, %s33
        %p593 = scmp.lt.s32.totalorder %s592, 5
        %s594 = scalar_select %p593, %s592, 5
        %s595 = smul.addr %s594, 4
        %s596 = scalar_lea.vmem %s0, %s595
        %p597 = pneg %p54
        %p598 = pneg %p51
        %p599 = pneg %p75
        %p600 = pneg %p72
        %p601 = pneg %p96
        %p602 = pneg %p93
        %p603 = pneg %p117
        %p604 = pneg %p114
        %p605 = pneg %p138
        %p606 = pneg %p135
        %p607 = pneg %p159
        %p608 = pneg %p156
        %p609 = pneg %p180
        %p610 = pneg %p177
        %p611 = pneg %p201
        %p612 = pneg %p198
        %p613 = pneg %p222
        %p614 = pneg %p219
        %p615 = pneg %p243
        %p616 = pneg %p240
        %p617 = pneg %p264
        %p618 = pneg %p261
        %p619 = pneg %p285
        %p620 = pneg %p282
        %p621 = pneg %p306
        %p622 = pneg %p303
        %p623 = pneg %p327
        %p624 = pneg %p324
        %p625 = pneg %p348
        %p626 = pneg %p345
        %p627 = pneg %p369
        %p628 = pneg %p366
        %p629 = pneg %p395
        %p630 = pneg %p392
        %s631 = smul.u32 2, %s33
        %p632 = scmp.lt.s32.totalorder %s631, 5
        %s633 = scalar_select %p632, %s631, 5
        %s634 = smul.addr %s633, 4
        %s635 = scalar_lea.vmem %s16, %s634
        %p636 = pneg %p416
        %p637 = pneg %p413
        %s638 = smul.u32 2, %s33
        %p639 = scmp.lt.s32.totalorder %s638, 5
        %s640 = scalar_select %p639, %s638, 5
        %s641 = smul.addr %s640, 4
        %s642 = scalar_lea.vmem %s0, %s641
        %s643 = smul.u32 2, %s33
        %s644 = smul.u32 2, %s33
        %p645 = scmp.lt.s32.totalorder %s644, 5
        %s646 = scalar_select %p645, %s644, 5
        %s647 = smul.addr %s646, 4
        %s648 = scalar_lea.vmem %s16, %s647
        %s649 = smul.u32 2, %s33
        %p650 = scmp.eq.s32.totalorder %s33, 0
        // Predicated region
        $region109: #{adaptive_pooling_classifier_forward.1} parent=83 // pred_check
          %p651 = pneg %p650
        $region110: #{adaptive_pooling_classifier_forward.1} parent=83 // pred_check_branch
          %653 = sbr.rel (%p651) target = $region112
        $region111: #{adaptive_pooling_classifier_forward.1} parent=83 // pred_region
          %654 = vst [vmem:[#allocation2] sm:$0x1] -inf
          %655 = vst [vmem:[#allocation3] sm:$0x1] 0.0
          %656 = vst [vmem:[#allocation4] sm:$0x1] 0.0
        $region112: #{adaptive_pooling_classifier_forward.1} parent=83 // pred_fallthru
          _
        %v657 = vld [vmem:[%s642] sm:$0xf]
        %v658 = vld [vmem:[%s642 + $0x4] sm:$0xf]
        %v659 = vld [vmem:[%s2] sm:$0xf]
        %v660 = vld [vmem:[%s2 + $0x4] sm:$0xf]
        %v661 = vld [vmem:[%s2 + $0x8] sm:$0xf]
        %v662 = vld [vmem:[%s2 + $0xc] sm:$0xf]
        %v663 = vld [vmem:[%s2 + $0x10] sm:$0xf]
        %v664 = vld [vmem:[%s2 + $0x14] sm:$0xf]
        %v665 = vld [vmem:[%s2 + $0x18] sm:$0xf]
        %v666 = vld [vmem:[%s2 + $0x1c] sm:$0xf]
        %v667 = vld [vmem:[%s2 + $0x20] sm:$0xf]
        %v668 = vld [vmem:[%s2 + $0x24] sm:$0xf]
        %v669 = vld [vmem:[%s2 + $0x28] sm:$0xf]
        %v670 = vld [vmem:[%s2 + $0x2c] sm:$0xf]
        %v671 = vld [vmem:[%s2 + $0x30] sm:$0xf]
        %v672 = vld [vmem:[%s2 + $0x34] sm:$0xf]
        %v673 = vld [vmem:[%s2 + $0x38] sm:$0xf]
        %v674 = vld [vmem:[%s2 + $0x3c] sm:$0xf]
        %v675 = vld [vmem:[%s3] sm:$0x1]
        %v677 = vperm.slane %v675, 0
        %v681 = vunpack.c.l.b16 %v657
        %v682 = vunpack.c.l.b16 %v658
        %v683 = vpack.c.b16 %v682, %v681
        %v701 = vunpack.c.l.b16 %v659
        %v702 = vunpack.c.l.b16 %v660
        %v703 = vunpack.c.l.b16 %v661
        %v704 = vunpack.c.l.b16 %v662
        %v705 = vunpack.c.l.b16 %v663
        %v706 = vunpack.c.l.b16 %v664
        %v707 = vunpack.c.l.b16 %v665
        %v708 = vunpack.c.l.b16 %v666
        %v709 = vunpack.c.l.b16 %v667
        %v710 = vunpack.c.l.b16 %v668
        %v711 = vunpack.c.l.b16 %v669
        %v712 = vunpack.c.l.b16 %v670
        %v713 = vunpack.c.l.b16 %v671
        %v714 = vunpack.c.l.b16 %v672
        %v715 = vunpack.c.l.b16 %v673
        %v716 = vunpack.c.l.b16 %v674
        %v717 = vpack.c.b16 %v702, %v701
        %v718 = vpack.c.b16 %v704, %v703
        %v719 = vpack.c.b16 %v706, %v705
        %v720 = vpack.c.b16 %v708, %v707
        %v721 = vpack.c.b16 %v710, %v709
        %v722 = vpack.c.b16 %v712, %v711
        %v723 = vpack.c.b16 %v714, %v713
        %v724 = vpack.c.b16 %v716, %v715
        %733 = vmatpush.bf16.msra.mxu0 %v724
        %734 = vmatpush.bf16.msra.mxu0 %v723
        %735 = vmatpush.bf16.msra.mxu0 %v722
        %736 = vmatpush.bf16.msra.mxu0 %v721
        %737 = vmatpush.bf16.msra.mxu0 %v720
        %738 = vmatpush.bf16.msra.mxu0 %v719
        %739 = vmatpush.bf16.msra.mxu0 %v718
        %740 = vmatpush.bf16.msra.mxu0 %v717
        %741 = vmatmul.bf16.gmra.mxu0 %v683
        %v742 = vpop.f32.mrf.mxu0
        %v743 = vadd.f32 %v677, %v742
        %v744 = vpop.f32.mrf.mxu0
        %v745 = vadd.f32 %v677, %v744
        %746 = vdwg.mxu0
        %v747 = vmax.f32 %v743, 0.0
        %v748 = vmax.f32 %v745, 0.0
        %v749 = vpack.c.bf16 %v748, %v747
        %v750 = vld [vmem:[#allocation5] sm:$0xf]
        %v751 = vld [vmem:[#allocation5 + $0x4] sm:$0xf]
        %v752 = vld [vmem:[#allocation5 + $0x8] sm:$0xf]
        %v753 = vld [vmem:[#allocation5 + $0xc] sm:$0xf]
        %v754 = vld [vmem:[#allocation5 + $0x10] sm:$0xf]
        %v755 = vld [vmem:[#allocation5 + $0x14] sm:$0xf]
        %v756 = vld [vmem:[#allocation5 + $0x18] sm:$0xf]
        %v757 = vld [vmem:[#allocation5 + $0x1c] sm:$0xf]
        %v758 = vld [vmem:[#allocation5 + $0x20] sm:$0xf]
        %v759 = vld [vmem:[#allocation5 + $0x24] sm:$0xf]
        %v760 = vld [vmem:[#allocation5 + $0x28] sm:$0xf]
        %v761 = vld [vmem:[#allocation5 + $0x2c] sm:$0xf]
        %v762 = vld [vmem:[#allocation5 + $0x30] sm:$0xf]
        %v763 = vld [vmem:[#allocation5 + $0x34] sm:$0xf]
        %v764 = vld [vmem:[#allocation5 + $0x38] sm:$0xf]
        %v765 = vld [vmem:[#allocation5 + $0x3c] sm:$0xf]
        %v766 = vld [vmem:[%s5] sm:$0x1]
        %v768 = vperm.slane %v766, 0
        %v786 = vunpack.c.l.b16 %v750
        %v787 = vunpack.c.l.b16 %v751
        %v788 = vunpack.c.l.b16 %v752
        %v789 = vunpack.c.l.b16 %v753
        %v790 = vunpack.c.l.b16 %v754
        %v791 = vunpack.c.l.b16 %v755
        %v792 = vunpack.c.l.b16 %v756
        %v793 = vunpack.c.l.b16 %v757
        %v794 = vunpack.c.l.b16 %v758
        %v795 = vunpack.c.l.b16 %v759
        %v796 = vunpack.c.l.b16 %v760
        %v797 = vunpack.c.l.b16 %v761
        %v798 = vunpack.c.l.b16 %v762
        %v799 = vunpack.c.l.b16 %v763
        %v800 = vunpack.c.l.b16 %v764
        %v801 = vunpack.c.l.b16 %v765
        %v802 = vpack.c.b16 %v787, %v786
        %v803 = vpack.c.b16 %v789, %v788
        %v804 = vpack.c.b16 %v791, %v790
        %v805 = vpack.c.b16 %v793, %v792
        %v806 = vpack.c.b16 %v795, %v794
        %v807 = vpack.c.b16 %v797, %v796
        %v808 = vpack.c.b16 %v799, %v798
        %v809 = vpack.c.b16 %v801, %v800
        %818 = vmatpush.bf16.msra.mxu0 %v809
        %819 = vmatpush.bf16.msra.mxu0 %v808
        %820 = vmatpush.bf16.msra.mxu0 %v807
        %821 = vmatpush.bf16.msra.mxu0 %v806
        %822 = vmatpush.bf16.msra.mxu0 %v805
        %823 = vmatpush.bf16.msra.mxu0 %v804
        %824 = vmatpush.bf16.msra.mxu0 %v803
        %825 = vmatpush.bf16.msra.mxu0 %v802
        %826 = vmatmul.bf16.gmra.mxu0 %v749
        %v827 = vpop.f32.mrf.mxu0
        %v828 = vadd.f32 %v768, %v827
        %v829 = vpop.f32.mrf.mxu0
        %v830 = vadd.f32 %v768, %v829
        %831 = vdwg.mxu0
        %v832 = vmax.f32 %v828, 0.0
        %v833 = vmax.f32 %v830, 0.0
        %v834 = vpack.c.bf16 %v833, %v832
        %v835 = vld [vmem:[#allocation7] sm:$0xf]
        %v836 = vld [vmem:[#allocation7 + $0x4] sm:$0xf]
        %v837 = vld [vmem:[#allocation7 + $0x8] sm:$0xf]
        %v838 = vld [vmem:[#allocation7 + $0xc] sm:$0xf]
        %v839 = vld [vmem:[#allocation7 + $0x10] sm:$0xf]
        %v840 = vld [vmem:[#allocation7 + $0x14] sm:$0xf]
        %v841 = vld [vmem:[#allocation7 + $0x18] sm:$0xf]
        %v842 = vld [vmem:[#allocation7 + $0x1c] sm:$0xf]
        %v843 = vld [vmem:[#allocation7 + $0x20] sm:$0xf]
        %v844 = vld [vmem:[#allocation7 + $0x24] sm:$0xf]
        %v845 = vld [vmem:[#allocation7 + $0x28] sm:$0xf]
        %v846 = vld [vmem:[#allocation7 + $0x2c] sm:$0xf]
        %v847 = vld [vmem:[#allocation7 + $0x30] sm:$0xf]
        %v848 = vld [vmem:[#allocation7 + $0x34] sm:$0xf]
        %v849 = vld [vmem:[#allocation7 + $0x38] sm:$0xf]
        %v850 = vld [vmem:[#allocation7 + $0x3c] sm:$0xf]
        %v851 = vld [vmem:[%s7] sm:$0x1]
        %v853 = vperm.slane %v851, 0
        %v871 = vunpack.c.l.b16 %v835
        %v872 = vunpack.c.l.b16 %v836
        %v873 = vunpack.c.l.b16 %v837
        %v874 = vunpack.c.l.b16 %v838
        %v875 = vunpack.c.l.b16 %v839
        %v876 = vunpack.c.l.b16 %v840
        %v877 = vunpack.c.l.b16 %v841
        %v878 = vunpack.c.l.b16 %v842
        %v879 = vunpack.c.l.b16 %v843
        %v880 = vunpack.c.l.b16 %v844
        %v881 = vunpack.c.l.b16 %v845
        %v882 = vunpack.c.l.b16 %v846
        %v883 = vunpack.c.l.b16 %v847
        %v884 = vunpack.c.l.b16 %v848
        %v885 = vunpack.c.l.b16 %v849
        %v886 = vunpack.c.l.b16 %v850
        %v887 = vpack.c.b16 %v872, %v871
        %v888 = vpack.c.b16 %v874, %v873
        %v889 = vpack.c.b16 %v876, %v875
        %v890 = vpack.c.b16 %v878, %v877
        %v891 = vpack.c.b16 %v880, %v879
        %v892 = vpack.c.b16 %v882, %v881
        %v893 = vpack.c.b16 %v884, %v883
        %v894 = vpack.c.b16 %v886, %v885
        %903 = vmatpush.bf16.msra.mxu0 %v894
        %904 = vmatpush.bf16.msra.mxu0 %v893
        %905 = vmatpush.bf16.msra.mxu0 %v892
        %906 = vmatpush.bf16.msra.mxu0 %v891
        %907 = vmatpush.bf16.msra.mxu0 %v890
        %908 = vmatpush.bf16.msra.mxu0 %v889
        %909 = vmatpush.bf16.msra.mxu0 %v888
        %910 = vmatpush.bf16.msra.mxu0 %v887
        %911 = vmatmul.bf16.gmra.mxu0 %v834
        %v912 = vpop.f32.mrf.mxu0
        %v913 = vadd.f32 %v853, %v912
        %v914 = vpop.f32.mrf.mxu0
        %v915 = vadd.f32 %v853, %v914
        %916 = vdwg.mxu0
        %v917 = vmax.f32 %v913, 0.0
        %v918 = vmax.f32 %v915, 0.0
        %v919 = vpack.c.bf16 %v918, %v917
        %v920 = vld [vmem:[#allocation9] sm:$0xf]
        %v921 = vld [vmem:[#allocation9 + $0x4] sm:$0xf]
        %v922 = vld [vmem:[#allocation9 + $0x8] sm:$0xf]
        %v923 = vld [vmem:[#allocation9 + $0xc] sm:$0xf]
        %v924 = vld [vmem:[#allocation9 + $0x10] sm:$0xf]
        %v925 = vld [vmem:[#allocation9 + $0x14] sm:$0xf]
        %v926 = vld [vmem:[#allocation9 + $0x18] sm:$0xf]
        %v927 = vld [vmem:[#allocation9 + $0x1c] sm:$0xf]
        %v928 = vld [vmem:[#allocation9 + $0x20] sm:$0xf]
        %v929 = vld [vmem:[#allocation9 + $0x24] sm:$0xf]
        %v930 = vld [vmem:[#allocation9 + $0x28] sm:$0xf]
        %v931 = vld [vmem:[#allocation9 + $0x2c] sm:$0xf]
        %v932 = vld [vmem:[#allocation9 + $0x30] sm:$0xf]
        %v933 = vld [vmem:[#allocation9 + $0x34] sm:$0xf]
        %v934 = vld [vmem:[#allocation9 + $0x38] sm:$0xf]
        %v935 = vld [vmem:[#allocation9 + $0x3c] sm:$0xf]
        %v936 = vld [vmem:[%s9] sm:$0x1]
        %v938 = vperm.slane %v936, 0
        %v956 = vunpack.c.l.b16 %v920
        %v957 = vunpack.c.l.b16 %v921
        %v958 = vunpack.c.l.b16 %v922
        %v959 = vunpack.c.l.b16 %v923
        %v960 = vunpack.c.l.b16 %v924
        %v961 = vunpack.c.l.b16 %v925
        %v962 = vunpack.c.l.b16 %v926
        %v963 = vunpack.c.l.b16 %v927
        %v964 = vunpack.c.l.b16 %v928
        %v965 = vunpack.c.l.b16 %v929
        %v966 = vunpack.c.l.b16 %v930
        %v967 = vunpack.c.l.b16 %v931
        %v968 = vunpack.c.l.b16 %v932
        %v969 = vunpack.c.l.b16 %v933
        %v970 = vunpack.c.l.b16 %v934
        %v971 = vunpack.c.l.b16 %v935
        %v972 = vpack.c.b16 %v957, %v956
        %v973 = vpack.c.b16 %v959, %v958
        %v974 = vpack.c.b16 %v961, %v960
        %v975 = vpack.c.b16 %v963, %v962
        %v976 = vpack.c.b16 %v965, %v964
        %v977 = vpack.c.b16 %v967, %v966
        %v978 = vpack.c.b16 %v969, %v968
        %v979 = vpack.c.b16 %v971, %v970
        %988 = vmatpush.bf16.msra.mxu0 %v979
        %989 = vmatpush.bf16.msra.mxu0 %v978
        %990 = vmatpush.bf16.msra.mxu0 %v977
        %991 = vmatpush.bf16.msra.mxu0 %v976
        %992 = vmatpush.bf16.msra.mxu0 %v975
        %993 = vmatpush.bf16.msra.mxu0 %v974
        %994 = vmatpush.bf16.msra.mxu0 %v973
        %995 = vmatpush.bf16.msra.mxu0 %v972
        %996 = vmatmul.bf16.gmra.mxu0 %v919
        %v997 = vpop.f32.mrf.mxu0
        %v998 = vadd.f32 %v938, %v997
        %v999 = vpop.f32.mrf.mxu0
        %v1000 = vadd.f32 %v938, %v999
        %1001 = vdwg.mxu0
        %v1002 = vmax.f32 %v998, 0.0
        %v1003 = vmax.f32 %v1000, 0.0
        %v1004 = vpack.c.bf16 %v1003, %v1002
        %v1005 = vld [vmem:[#allocation10] sm:$0xf]
        %v1006 = vld [vmem:[#allocation10 + $0x4] sm:$0xf]
        %v1007 = vld [vmem:[#allocation10 + $0x8] sm:$0xf]
        %v1008 = vld [vmem:[#allocation10 + $0xc] sm:$0xf]
        %v1009 = vld [vmem:[#allocation10 + $0x10] sm:$0xf]
        %v1010 = vld [vmem:[#allocation10 + $0x14] sm:$0xf]
        %v1011 = vld [vmem:[#allocation10 + $0x18] sm:$0xf]
        %v1012 = vld [vmem:[#allocation10 + $0x1c] sm:$0xf]
        %v1013 = vld [vmem:[#allocation10 + $0x20] sm:$0xf]
        %v1014 = vld [vmem:[#allocation10 + $0x24] sm:$0xf]
        %v1015 = vld [vmem:[#allocation10 + $0x28] sm:$0xf]
        %v1016 = vld [vmem:[#allocation10 + $0x2c] sm:$0xf]
        %v1017 = vld [vmem:[#allocation10 + $0x30] sm:$0xf]
        %v1018 = vld [vmem:[#allocation10 + $0x34] sm:$0xf]
        %v1019 = vld [vmem:[#allocation10 + $0x38] sm:$0xf]
        %v1020 = vld [vmem:[#allocation10 + $0x3c] sm:$0xf]
        %v1021 = vld [vmem:[%s11] sm:$0x1]
        %v1023 = vperm.slane %v1021, 0
        %v1041 = vunpack.c.l.b16 %v1005
        %v1042 = vunpack.c.l.b16 %v1006
        %v1043 = vunpack.c.l.b16 %v1007
        %v1044 = vunpack.c.l.b16 %v1008
        %v1045 = vunpack.c.l.b16 %v1009
        %v1046 = vunpack.c.l.b16 %v1010
        %v1047 = vunpack.c.l.b16 %v1011
        %v1048 = vunpack.c.l.b16 %v1012
        %v1049 = vunpack.c.l.b16 %v1013
        %v1050 = vunpack.c.l.b16 %v1014
        %v1051 = vunpack.c.l.b16 %v1015
        %v1052 = vunpack.c.l.b16 %v1016
        %v1053 = vunpack.c.l.b16 %v1017
        %v1054 = vunpack.c.l.b16 %v1018
        %v1055 = vunpack.c.l.b16 %v1019
        %v1056 = vunpack.c.l.b16 %v1020
        %v1057 = vpack.c.b16 %v1042, %v1041
        %v1058 = vpack.c.b16 %v1044, %v1043
        %v1059 = vpack.c.b16 %v1046, %v1045
        %v1060 = vpack.c.b16 %v1048, %v1047
        %v1061 = vpack.c.b16 %v1050, %v1049
        %v1062 = vpack.c.b16 %v1052, %v1051
        %v1063 = vpack.c.b16 %v1054, %v1053
        %v1064 = vpack.c.b16 %v1056, %v1055
        %1073 = vmatpush.bf16.msra.mxu0 %v1064
        %1074 = vmatpush.bf16.msra.mxu0 %v1063
        %1075 = vmatpush.bf16.msra.mxu0 %v1062
        %1076 = vmatpush.bf16.msra.mxu0 %v1061
        %1077 = vmatpush.bf16.msra.mxu0 %v1060
        %1078 = vmatpush.bf16.msra.mxu0 %v1059
        %1079 = vmatpush.bf16.msra.mxu0 %v1058
        %1080 = vmatpush.bf16.msra.mxu0 %v1057
        %1081 = vmatmul.bf16.gmra.mxu0 %v1004
        %v1082 = vpop.f32.mrf.mxu0
        %v1083 = vadd.f32 %v1023, %v1082
        %v1084 = vpop.f32.mrf.mxu0
        %v1085 = vadd.f32 %v1023, %v1084
        %1086 = vdwg.mxu0
        %v1087 = vmax.f32 %v1083, 0.0
        %v1088 = vmax.f32 %v1085, 0.0
        %v1089 = vpack.c.bf16 %v1088, %v1087
        %v1090 = vld [vmem:[#allocation12] sm:$0xf]
        %v1091 = vld [vmem:[#allocation12 + $0x4] sm:$0xf]
        %v1092 = vld [vmem:[#allocation12 + $0x8] sm:$0xf]
        %v1093 = vld [vmem:[#allocation12 + $0xc] sm:$0xf]
        %v1094 = vld [vmem:[#allocation12 + $0x10] sm:$0xf]
        %v1095 = vld [vmem:[#allocation12 + $0x14] sm:$0xf]
        %v1096 = vld [vmem:[#allocation12 + $0x18] sm:$0xf]
        %v1097 = vld [vmem:[#allocation12 + $0x1c] sm:$0xf]
        %v1098 = vld [vmem:[#allocation12 + $0x20] sm:$0xf]
        %v1099 = vld [vmem:[#allocation12 + $0x24] sm:$0xf]
        %v1100 = vld [vmem:[#allocation12 + $0x28] sm:$0xf]
        %v1101 = vld [vmem:[#allocation12 + $0x2c] sm:$0xf]
        %v1102 = vld [vmem:[#allocation12 + $0x30] sm:$0xf]
        %v1103 = vld [vmem:[#allocation12 + $0x34] sm:$0xf]
        %v1104 = vld [vmem:[#allocation12 + $0x38] sm:$0xf]
        %v1105 = vld [vmem:[#allocation12 + $0x3c] sm:$0xf]
        %v1106 = vld [vmem:[%s13] sm:$0x1]
        %v1108 = vperm.slane %v1106, 0
        %v1126 = vunpack.c.l.b16 %v1090
        %v1127 = vunpack.c.l.b16 %v1091
        %v1128 = vunpack.c.l.b16 %v1092
        %v1129 = vunpack.c.l.b16 %v1093
        %v1130 = vunpack.c.l.b16 %v1094
        %v1131 = vunpack.c.l.b16 %v1095
        %v1132 = vunpack.c.l.b16 %v1096
        %v1133 = vunpack.c.l.b16 %v1097
        %v1134 = vunpack.c.l.b16 %v1098
        %v1135 = vunpack.c.l.b16 %v1099
        %v1136 = vunpack.c.l.b16 %v1100
        %v1137 = vunpack.c.l.b16 %v1101
        %v1138 = vunpack.c.l.b16 %v1102
        %v1139 = vunpack.c.l.b16 %v1103
        %v1140 = vunpack.c.l.b16 %v1104
        %v1141 = vunpack.c.l.b16 %v1105
        %v1142 = vpack.c.b16 %v1127, %v1126
        %v1143 = vpack.c.b16 %v1129, %v1128
        %v1144 = vpack.c.b16 %v1131, %v1130
        %v1145 = vpack.c.b16 %v1133, %v1132
        %v1146 = vpack.c.b16 %v1135, %v1134
        %v1147 = vpack.c.b16 %v1137, %v1136
        %v1148 = vpack.c.b16 %v1139, %v1138
        %v1149 = vpack.c.b16 %v1141, %v1140
        %1158 = vmatpush.bf16.msra.mxu0 %v1149
        %1159 = vmatpush.bf16.msra.mxu0 %v1148
        %1160 = vmatpush.bf16.msra.mxu0 %v1147
        %1161 = vmatpush.bf16.msra.mxu0 %v1146
        %1162 = vmatpush.bf16.msra.mxu0 %v1145
        %1163 = vmatpush.bf16.msra.mxu0 %v1144
        %1164 = vmatpush.bf16.msra.mxu0 %v1143
        %1165 = vmatpush.bf16.msra.mxu0 %v1142
        %1166 = vmatmul.bf16.gmra.mxu0 %v1089
        %v1167 = vpop.f32.mrf.mxu0
        %v1168 = vadd.f32 %v1108, %v1167
        %v1169 = vpop.f32.mrf.mxu0
        %v1170 = vadd.f32 %v1108, %v1169
        %1171 = vdwg.mxu0
        %v1172 = vmax.f32 %v1168, 0.0
        %v1173 = vmax.f32 %v1170, 0.0
        %v1174 = vpack.c.bf16 %v1173, %v1172
        %v1175 = vld [vmem:[#allocation13] sm:$0xf]
        %v1176 = vld [vmem:[#allocation13 + $0x4] sm:$0xf]
        %v1177 = vld [vmem:[#allocation13 + $0x8] sm:$0xf]
        %v1178 = vld [vmem:[#allocation13 + $0xc] sm:$0xf]
        %v1179 = vld [vmem:[#allocation13 + $0x10] sm:$0xf]
        %v1180 = vld [vmem:[#allocation13 + $0x14] sm:$0xf]
        %v1181 = vld [vmem:[#allocation13 + $0x18] sm:$0xf]
        %v1182 = vld [vmem:[#allocation13 + $0x1c] sm:$0xf]
        %v1183 = vld [vmem:[#allocation13 + $0x20] sm:$0xf]
        %v1184 = vld [vmem:[#allocation13 + $0x24] sm:$0xf]
        %v1185 = vld [vmem:[#allocation13 + $0x28] sm:$0xf]
        %v1186 = vld [vmem:[#allocation13 + $0x2c] sm:$0xf]
        %v1187 = vld [vmem:[#allocation13 + $0x30] sm:$0xf]
        %v1188 = vld [vmem:[#allocation13 + $0x34] sm:$0xf]
        %v1189 = vld [vmem:[#allocation13 + $0x38] sm:$0xf]
        %v1190 = vld [vmem:[#allocation13 + $0x3c] sm:$0xf]
        %v1191 = vld [vmem:[%s15] sm:$0x1]
        %v1193 = vperm.slane %v1191, 0
        %v1211 = vunpack.c.l.b16 %v1175
        %v1212 = vunpack.c.l.b16 %v1176
        %v1213 = vunpack.c.l.b16 %v1177
        %v1214 = vunpack.c.l.b16 %v1178
        %v1215 = vunpack.c.l.b16 %v1179
        %v1216 = vunpack.c.l.b16 %v1180
        %v1217 = vunpack.c.l.b16 %v1181
        %v1218 = vunpack.c.l.b16 %v1182
        %v1219 = vunpack.c.l.b16 %v1183
        %v1220 = vunpack.c.l.b16 %v1184
        %v1221 = vunpack.c.l.b16 %v1185
        %v1222 = vunpack.c.l.b16 %v1186
        %v1223 = vunpack.c.l.b16 %v1187
        %v1224 = vunpack.c.l.b16 %v1188
        %v1225 = vunpack.c.l.b16 %v1189
        %v1226 = vunpack.c.l.b16 %v1190
        %v1227 = vpack.c.b16 %v1212, %v1211
        %v1228 = vpack.c.b16 %v1214, %v1213
        %v1229 = vpack.c.b16 %v1216, %v1215
        %v1230 = vpack.c.b16 %v1218, %v1217
        %v1231 = vpack.c.b16 %v1220, %v1219
        %v1232 = vpack.c.b16 %v1222, %v1221
        %v1233 = vpack.c.b16 %v1224, %v1223
        %v1234 = vpack.c.b16 %v1226, %v1225
        %1243 = vmatpush.bf16.msra.mxu0 %v1234
        %1244 = vmatpush.bf16.msra.mxu0 %v1233
        %1245 = vmatpush.bf16.msra.mxu0 %v1232
        %1246 = vmatpush.bf16.msra.mxu0 %v1231
        %1247 = vmatpush.bf16.msra.mxu0 %v1230
        %1248 = vmatpush.bf16.msra.mxu0 %v1229
        %1249 = vmatpush.bf16.msra.mxu0 %v1228
        %1250 = vmatpush.bf16.msra.mxu0 %v1227
        %1251 = vmatmul.bf16.gmra.mxu0 %v1174
        %v1252 = vpop.f32.mrf.mxu0
        %v1253 = vadd.f32 %v1193, %v1252
        %v1254 = vpop.f32.mrf.mxu0
        %v1255 = vadd.f32 %v1193, %v1254
        %1256 = vdwg.mxu0
        %v1257 = vpack.c.bf16 %v1253, %v1253
        %v1258 = vpack.c.bf16 %v1255, %v1255
        %1259 = vst [vmem:[%s648] sm:$0xf] %v1257
        %1260 = vst [vmem:[%s648 + $0x4] sm:$0xf] %v1258
        %s1261 = smul.u32 %s33, 16
        %v1262 = vlaneseq
        %v1263 = vshrl.u32 %v1262, 7
        %v1264 = vadd.s32 %v1263, 8
        %v1265 = vstv %s1261
        %v1266 = vadd.s32 %v1265, %v1263
        %v1267 = vadd.s32 %v1265, %v1264
        %vm1268 = vcmp.lt.s32.totalorder %v1266, 40
        %vm1269 = vcmp.lt.s32.totalorder %v1267, 40
        %v1270 = vld [vmem:[%s1] sm:$0x1]
        %v1272 = vperm.slane %v1270, 0
        %v1274 = vmul.f32 %v1253, %v1272
        %v1275 = vmul.f32 %v1255, %v1272
        %v1276 = vsel %vm1268, %v1274, -inf
        %v1277 = vsel %vm1269, %v1275, -inf
        %v1278 = vld [vmem:[#allocation2] sm:$0x1]
        %v1279 = vmax.f32 %v1276, %v1277
        %v1280 = vrot.slane %v1279, 4
        %v1281 = vmax.f32 %v1279, %v1280
        %v1282 = vrot.slane %v1281, 2
        %v1283 = vmax.f32 %v1281, %v1282
        %v1284 = vrot.slane %v1283, 1
        %v1285 = vmax.f32 %v1283, %v1284
        %v1286 = vmax.f32 %v1278, %v1285
        %v1287 = vsub.f32 %v1278, %v1286
        %v1288 = vmul.f32 %v1287, 1.442695
        %v1289 = vpow.pop %v1288
        %v1291 = vperm.slane %v1286, 0
        %v1293 = vsub.f32 %v1276, %v1291
        %v1294 = vsub.f32 %v1277, %v1291
        %v1295 = vmul.f32 %v1293, 1.442695
        %v1296 = vpow.pop %v1295
        %v1297 = vmul.f32 %v1294, 1.442695
        %v1298 = vpow.pop %v1297
        %v1299 = vld [vmem:[#allocation3] sm:$0x1]
        %v1300 = vmul.f32 %v1289, %v1299
        %v1301 = vadd.f32 %v1296, %v1298
        %v1302 = vrot.slane %v1301, 4
        %v1303 = vadd.f32 %v1301, %v1302
        %v1304 = vrot.slane %v1303, 2
        %v1305 = vadd.f32 %v1303, %v1304
        %v1306 = vrot.slane %v1305, 1
        %v1307 = vadd.f32 %v1305, %v1306
        %v1308 = vadd.f32 %v1300, %v1307
        %1309 = vst [vmem:[#allocation3] sm:$0x1] %v1308
        %v1310 = vld [vmem:[#allocation4] sm:$0x1]
        %v1311 = vmul.f32 %v1289, %v1310
        %v1312 = vmul.f32 %v1253, %v1296
        %v1313 = vmul.f32 %v1255, %v1298
        %v1314 = vadd.f32 %v1312, %v1313
        %v1315 = vrot.slane %v1314, 4
        %v1316 = vadd.f32 %v1314, %v1315
        %v1317 = vrot.slane %v1316, 2
        %v1318 = vadd.f32 %v1316, %v1317
        %v1319 = vrot.slane %v1318, 1
        %v1320 = vadd.f32 %v1318, %v1319
        %v1321 = vadd.f32 %v1311, %v1320
        %1322 = vst [vmem:[#allocation4] sm:$0x1] %v1321
        %1323 = vst [vmem:[#allocation2] sm:$0x1] %v1286
        %p1324 = scmp.eq.s32.totalorder %s33, 2
        // Predicated region
        $region113: #{adaptive_pooling_classifier_forward.1} parent=83 // pred_check
          %p1325 = pneg %p1324
        $region114: #{adaptive_pooling_classifier_forward.1} parent=83 // pred_check_branch
          %1327 = sbr.rel (%p1325) target = $region116
        $region115: #{adaptive_pooling_classifier_forward.1} parent=83 // pred_region
          %v1328 = vld [vmem:[#allocation4] sm:$0x1]
          %v1329 = vld [vmem:[#allocation3] sm:$0x1]
          %v1330 = vrcp.pop %v1329
          %v1331 = vmul.f32 %v1329, %v1330
          %v1332 = vsub.f32 1.0, %v1331
          %v1333 = vmul.f32 %v1330, %v1332
          %v1334 = vadd.f32 %v1330, %v1333
          %vm1335 = vweird.f32 %v1329
          %vm1336 = vweird.f32 %v1330
          %vm1337 = vmor %vm1335, %vm1336
          %v1338 = vsel %vm1337, %v1330, %v1334
          %v1339 = vand.u32 2147483647, %v1329
          %vm1340 = vcmp.eq.f32.partialorder %v1339, 8.507059e+37
          %v1341 = vand.u32 %v1329, 2147483648
          %v1342 = vor.u32 1.1754944e-38, %v1341
          %v1343 = vsel %vm1340, %v1342, %v1338
          %v1344 = vmul.f32 %v1328, %v1343
          %1345 = vst [vmem:[%s17] sm:$0x1] %v1344
        $region116: #{adaptive_pooling_classifier_forward.1} parent=83 // pred_fallthru
          _
        %s1346 = smul.u32 2, %s33
        %p1347 = scmp.lt.s32.totalorder %s1346, 5
        %s1348 = scalar_select %p1347, %s1346, 5
        %s1349 = smul.addr %s1348, 4
        %s1350 = scalar_lea.vmem %s16, %s1349
        // Predicated region
        $region117: #{adaptive_pooling_classifier_forward.1} parent=83 // pred_check
          %p1351 = pneg %p392
        $region118: #{adaptive_pooling_classifier_forward.1} parent=83 // pred_check_branch
          %1353 = sbr.rel (%p1351) target = $region120
        $region119: #{adaptive_pooling_classifier_forward.1} parent=83 // pred_region
          %s1354 = smul.u32 2, %s33
        $region120: #{adaptive_pooling_classifier_forward.1} parent=83 // pred_fallthru
          _
        // Predicated region
        $region121: #{adaptive_pooling_classifier_forward.1} parent=83 // pred_check
          %p1355 = pneg %p413
        $region122: #{adaptive_pooling_classifier_forward.1} parent=83 // pred_check_branch
          %1357 = sbr.rel (%p1355) target = $region124
        $region123: #{adaptive_pooling_classifier_forward.1} parent=83 // pred_region
          _
        $region124: #{adaptive_pooling_classifier_forward.1} parent=83 // pred_fallthru
          _
        // Predicated region
        $region125: #{adaptive_pooling_classifier_forward.1} parent=83 // pred_check
          %p1358 = pneg %p413
        $region126: #{adaptive_pooling_classifier_forward.1} parent=83 // pred_check_branch
          %1360 = sbr.rel (%p1358) target = $region128
        $region127: #{adaptive_pooling_classifier_forward.1} parent=83 // pred_region
          _
        $region128: #{adaptive_pooling_classifier_forward.1} parent=83 // pred_fallthru
          _
      $region84: #{adaptive_pooling_classifier_forward.1} parent=5 // pred_fallthru
        _
      %p1361 = scmp.le.s32.totalorder 2, %s28
      // Predicated region
      $region129: #{adaptive_pooling_classifier_forward.1} parent=5 // pred_check
        %p1362 = pneg %p1361
      $region130: #{adaptive_pooling_classifier_forward.1} parent=5 // pred_check_branch
        %1364 = sbr.rel (%p1362) target = $region132
      $region131: #{adaptive_pooling_classifier_forward.1} parent=5 // pred_region
        %s1365 = ssub.s32 %s28, 2
        // Predicated region
        $region133: #{adaptive_pooling_classifier_forward.1} parent=131 // pred_check
          %p1366 = pneg %p398
        $region134: #{adaptive_pooling_classifier_forward.1} parent=131 // pred_check_branch
          %1368 = sbr.rel (%p1366) target = $region136
        $region135: #{adaptive_pooling_classifier_forward.1} parent=131 // pred_region
          %s1369 = smul.u32 2, %s34
          %p1370 = scmp.lt.s32.totalorder %s1369, 5
          %s1371 = scalar_select %p1370, %s1369, 5
          %s1372 = smul.addr %s1371, 4
          %s1373 = scalar_lea.vmem %s16, %s1372
        $region136: #{adaptive_pooling_classifier_forward.1} parent=131 // pred_fallthru
          _
      $region132: #{adaptive_pooling_classifier_forward.1} parent=5 // pred_fallthru
        _
    $region6: #{adaptive_pooling_classifier_forward.1} parent=1 // loop_footer
      %s32 = sadd.s32 1, %s28
    $region7: #{adaptive_pooling_classifier_forward.1} parent=1 // loop_footer_branch
      %27 = sbr.rel target = $region3
    $region8: #{adaptive_pooling_classifier_forward.1} parent=1 // loop_exit
      _
    %1374 = vsyncpa [#allocation6], 1
    %s1375 = scalar_lea.sflag [#allocation6], 1
    %1376 = vsyncpa %s1375, 1
    %1377 = vsyncpa [#allocation8], 1
    %1378 = vsyncpa [#allocation11], 1
    %1379 = vsyncpa [#allocation14], 1

</llo_original>
